<compile_context>
chip_gen: v7x
topology: tpu7x:2x2x1
jax: 0.10.0
libtpu: 0.0.40
codegen_flags: <defaults>
</compile_context>

<pallas_src>
import numpy as np
import jax
import jax.numpy as jnp
from jax.experimental import pallas as pl
from jax.experimental.pallas import tpu as pltpu

# ----- module configuration (defaults of LGNGenerator_Azaixia_5_c) ------------------
NOISE_SIZE = 50
C_SIZE = 5
HIDDEN_SIZES = [100, 100, 100, 100]
OUTPUT_SIZES = [1, 1, 1, 1, 1]          # 5 categorical heads of size 1
N_VARS = len(OUTPUT_SIZES)
TOTAL_OUT = sum(OUTPUT_SIZES)
assert all(s == OUTPUT_SIZES[0] for s in OUTPUT_SIZES), "uniform head sizes assumed"
HEAD_SIZE = OUTPUT_SIZES[0]
BN_EPS = 1e-5

# ----- packed-parameter layout (one VMEM slab, each entry 8-row aligned) -------------
_PACK_ENTRIES = [
    ("We",    C_SIZE,            C_SIZE),           # exp linear weight   (in, out)
    ("be",    1,                 C_SIZE),           # exp linear bias
    ("W1n",   NOISE_SIZE,        HIDDEN_SIZES[0]),  # hidden-1 weight, noise part
    ("W1c",   C_SIZE,            HIDDEN_SIZES[0]),  # hidden-1 weight, exp(c) part
    ("b1",    1,                 HIDDEN_SIZES[0]),
    ("W2",    HIDDEN_SIZES[0],   HIDDEN_SIZES[1]),  # b2..b4 dropped (cancel under BN)
    ("W3",    HIDDEN_SIZES[1],   HIDDEN_SIZES[2]),
    ("W4",    HIDDEN_SIZES[2],   HIDDEN_SIZES[3]),
    ("gamma", 3,                 HIDDEN_SIZES[3]),  # 3 BatchNorm layers
    ("beta",  3,                 HIDDEN_SIZES[3]),
    ("Wo",    HIDDEN_SIZES[3],   TOTAL_OUT),        # fused MultiCategorical linear
    ("bo",    1,                 TOTAL_OUT),
    ("adjT",  TOTAL_OUT,         TOTAL_OUT),        # adj_new1^T (precomputed in wrapper)
]


def _layout():
    offs, shp, r = {}, {}, 0
    for name, rows, cols in _PACK_ENTRIES:
        offs[name] = r
        shp[name] = (rows, cols)
        r += ((rows + 7) // 8) * 8       # keep every slab sublane-aligned
    return offs, shp, r


PACK_OFFS, PACK_SHAPE, PACK_ROWS = _layout()
PACK_W = max(c for _, _, c in _PACK_ENTRIES)   # 100


def _pack(params, adjT):
    buf = jnp.zeros((PACK_ROWS, PACK_W), jnp.float32)
    vals = dict(params)
    vals["adjT"] = adjT
    for name, rows, cols in _PACK_ENTRIES:
        o = PACK_OFFS[name]
        buf = buf.at[o:o + rows, 0:cols].set(
            vals[name].reshape(rows, cols).astype(jnp.float32))
    return buf


# ----- fused kernel -------------------------------------------------------------------
def lgn_kernel(noise_ref, c_ref, p_ref, wa_ref, out_ref, probs_ref):
    def slab(name):
        o = PACK_OFFS[name]
        r, cc = PACK_SHAPE[name]
        return p_ref[o:o + r, 0:cc]          # static ref-view slice, zero runtime cost

    wa = wa_ref[0, 0]                        # scalar Wa from SMEM
    inv_b = 1.0 / noise_ref.shape[0]

    # self.exp: Linear on the condition vector c
    ec = jnp.dot(c_ref[...], slab("We"), preferred_element_type=jnp.float32) + slab("be")

    # hidden layer 1 (Linear -> ReLU). torch.cat((noise, exp(c)), 1) expressed as a
    # split matmul so no in-kernel concat/relayout is needed.
    a = (jnp.dot(noise_ref[...], slab("W1n"), preferred_element_type=jnp.float32)
         + jnp.dot(ec, slab("W1c"), preferred_element_type=jnp.float32)
         + slab("b1"))
    h = jnp.maximum(a, 0.0)

    # hidden layers 2..4: Linear (bias omitted - cancels exactly under training-mode BN)
    # -> BatchNorm1d (training mode, one-pass batch statistics) -> ReLU
    go, bto = PACK_OFFS["gamma"], PACK_OFFS["beta"]
    hw = HIDDEN_SIZES[-1]
    for i, wname in enumerate(("W2", "W3", "W4")):
        a = jnp.dot(h, slab(wname), preferred_element_type=jnp.float32)
        sx = jnp.sum(a, axis=0, keepdims=True)          # independent XLU reduces
        sxx = jnp.sum(a * a, axis=0, keepdims=True)
        mu = sx * inv_b
        var = jnp.maximum(sxx * inv_b - mu * mu, 0.0)
        gamma = p_ref[go + i:go + i + 1, 0:hw]
        beta = p_ref[bto + i:bto + i + 1, 0:hw]
        h = jnp.maximum((a - mu) * jax.lax.rsqrt(var + BN_EPS) * gamma + beta, 0.0)

    # MultiCategorical: fused Linear over all heads, per-head softmax (deterministic path)
    logits = jnp.dot(h, slab("Wo"), preferred_element_type=jnp.float32) + slab("bo")
    # row-wise max is a valid stabilizer (constant within every head)
    e = jnp.exp(logits - jnp.max(logits, axis=1, keepdims=True))
    if HEAD_SIZE == 1:
        denom = e                      # single-class heads: softmax is identically 1
    else:
        # block-diagonal 0/1 mask built in-kernel (no extra operand DMAs), one MXU op
        row = jax.lax.broadcasted_iota(jnp.int32, (TOTAL_OUT, TOTAL_OUT), 0)
        col = jax.lax.broadcasted_iota(jnp.int32, (TOTAL_OUT, TOTAL_OUT), 1)
        blockdiag = ((row // HEAD_SIZE) == (col // HEAD_SIZE)).astype(jnp.float32)
        denom = jnp.dot(e, blockdiag, preferred_element_type=jnp.float32)
    probs = e / denom
    probs_ref[...] = probs

    # final_output = adj_A_new1 @ (output.unsqueeze(2) + Wa) - Wa   (row form)
    out_ref[...] = jnp.dot(probs + wa, slab("adjT"),
                           preferred_element_type=jnp.float32) - wa


# ----- wrapper ------------------------------------------------------------------------
def lgn_forward(params, noise, c):
    adj_A = params["adj_A"]
    adj_A1 = jnp.sinh(3.0 * adj_A)
    # TODO(synk): preprocess_adj_new1 runs in float64 with a matrix inverse in PyTorch;
    # TPUs have no f64 and Pallas no inverse, so this tiny (d,d) step stays in f32 JAX glue.
    d = adj_A.shape[0]
    adj_new1 = jnp.linalg.inv(jnp.eye(d, dtype=jnp.float32) - adj_A1.T)
    adjT = adj_new1.T                      # so final = (probs + Wa) @ adj_new1^T - Wa

    packed = _pack(params, adjT)
    B = noise.shape[0]

    final, probs = pl.pallas_call(
        lgn_kernel,
        out_shape=(jax.ShapeDtypeStruct((B, TOTAL_OUT), jnp.float32),
                   jax.ShapeDtypeStruct((B, TOTAL_OUT), jnp.float32)),
        # no grid: everything is tiny; 4 operands total (3 VMEM + 1 SMEM scalar)
        in_specs=[
            pl.BlockSpec(memory_space=pltpu.MemorySpace.VMEM),   # noise
            pl.BlockSpec(memory_space=pltpu.MemorySpace.VMEM),   # c
            pl.BlockSpec(memory_space=pltpu.MemorySpace.VMEM),   # packed params slab
            pl.BlockSpec(memory_space=pltpu.MemorySpace.SMEM),   # Wa scalar
        ],
        out_specs=(pl.BlockSpec(memory_space=pltpu.MemorySpace.VMEM),
                   pl.BlockSpec(memory_space=pltpu.MemorySpace.VMEM)),
    )(noise, c, packed, params["Wa"])

    return final, adj_A1, probs, params["Wa"]


# ----- parameter init (matches fresh PyTorch module defaults) --------------------------
def init_params(key):
    ks = jax.random.split(key, 8)
    params = {}
    params["adj_A"] = 0.1 * jax.random.normal(ks[0], (TOTAL_OUT, TOTAL_OUT), jnp.float32)
    params["Wa"] = jnp.zeros((1, 1), jnp.float32)        # module inits Wa to zeros

    def linear(k, fan_in, fan_out):
        kw, kb = jax.random.split(k)
        bound = 1.0 / np.sqrt(fan_in)
        W = jax.random.uniform(kw, (fan_in, fan_out), jnp.float32, -bound, bound)
        b = jax.random.uniform(kb, (1, fan_out), jnp.float32, -bound, bound)
        return W, b

    params["We"], params["be"] = linear(ks[1], C_SIZE, C_SIZE)
    W1, b1 = linear(ks[2], NOISE_SIZE + C_SIZE, HIDDEN_SIZES[0])
    params["W1n"], params["W1c"], params["b1"] = W1[:NOISE_SIZE], W1[NOISE_SIZE:], b1
    # hidden layers 2..4: biases not created - they cancel exactly under training-mode BN
    for i in range(1, 4):
        W, _ = linear(ks[2 + i], HIDDEN_SIZES[i - 1], HIDDEN_SIZES[i])
        params[f"W{i+1}"] = W
    params["gamma"] = jnp.ones((3, HIDDEN_SIZES[-1]), jnp.float32)   # fresh BN: gamma=1
    params["beta"] = jnp.zeros((3, HIDDEN_SIZES[-1]), jnp.float32)   # fresh BN: beta=0
    params["Wo"], params["bo"] = linear(ks[6], HIDDEN_SIZES[-1], TOTAL_OUT)
    return params


if __name__ == "__main__":
    B = 8
    key = jax.random.PRNGKey(0)
    k_noise, k_c, k_params = jax.random.split(key, 3)
    params = init_params(k_params)
    noise = jax.random.normal(k_noise, (B, NOISE_SIZE), jnp.float32)
    c = jax.random.normal(k_c, (B, C_SIZE), jnp.float32)

    final, adj_A1, probs, Wa = jax.jit(lgn_forward)(params, noise, c)
    jax.block_until_ready(final)

    assert final.shape == (B, TOTAL_OUT)
    assert probs.shape == (B, TOTAL_OUT)
    assert adj_A1.shape == (TOTAL_OUT, TOTAL_OUT)
    assert bool(jnp.all(jnp.isfinite(final)))
    # each categorical head's softmax probabilities should sum to 1
    head_sums = probs.reshape(B, N_VARS, -1).sum(-1)
    assert bool(jnp.allclose(head_sums, 1.0, atol=1e-4)), "softmax groups do not sum to 1"
    print("KERNEL_OK")
</pallas_src>

<mosaic_0001>
module attributes {stable_mosaic.version = 11 : i64} {
  func.func @lgn_kernel(%arg0: memref<8x50xf32, #tpu.memory_space<vmem>>, %arg1: memref<8x5xf32, #tpu.memory_space<vmem>>, %arg2: memref<536x100xf32, #tpu.memory_space<vmem>>, %arg3: memref<1x1xf32, #tpu.memory_space<smem>>, %arg4: memref<8x5xf32, #tpu.memory_space<vmem>>, %arg5: memref<8x5xf32, #tpu.memory_space<vmem>>) attributes {dimension_semantics = [], scalar_prefetch = 0 : i64, scratch_operands = 0 : i64, tpu.core_type = #tpu.core_type<tc>} {
    %c0 = arith.constant 0 : index
    %c0_0 = arith.constant 0 : index
    %0 = memref.load %arg3[%c0, %c0_0] : memref<1x1xf32, #tpu.memory_space<smem>>
    %c0_1 = arith.constant 0 : index
    %c0_2 = arith.constant 0 : index
    %1 = vector.load %arg1[%c0_1, %c0_2] : memref<8x5xf32, #tpu.memory_space<vmem>>, vector<8x5xf32>
    %c0_3 = arith.constant 0 : index
    %c0_4 = arith.constant 0 : index
    %2 = vector.load %arg2[%c0_3, %c0_4] : memref<536x100xf32, #tpu.memory_space<vmem>>, vector<5x5xf32>
    %cst = arith.constant dense<0.000000e+00> : vector<8x5xf32>
    %3 = tpu.matmul %1, %2, %cst {dimension_numbers = #tpu.dot_dimension_numbers<[1], [0], [0], [1], [0, 0, 1, 1], [], []>} : vector<8x5xf32>, vector<5x5xf32>, vector<8x5xf32> -> vector<8x5xf32>
    %c8 = arith.constant 8 : index
    %c0_5 = arith.constant 0 : index
    %4 = vector.load %arg2[%c8, %c0_5] : memref<536x100xf32, #tpu.memory_space<vmem>>, vector<1x5xf32>
    %5 = vector.broadcast %4 : vector<1x5xf32> to vector<8x5xf32>
    %6 = arith.addf %3, %5 : vector<8x5xf32>
    %c0_6 = arith.constant 0 : index
    %c0_7 = arith.constant 0 : index
    %7 = vector.load %arg0[%c0_6, %c0_7] : memref<8x50xf32, #tpu.memory_space<vmem>>, vector<8x50xf32>
    %c16 = arith.constant 16 : index
    %c0_8 = arith.constant 0 : index
    %8 = vector.load %arg2[%c16, %c0_8] : memref<536x100xf32, #tpu.memory_space<vmem>>, vector<50x100xf32>
    %cst_9 = arith.constant dense<0.000000e+00> : vector<8x100xf32>
    %9 = tpu.matmul %7, %8, %cst_9 {dimension_numbers = #tpu.dot_dimension_numbers<[1], [0], [0], [1], [0, 0, 1, 1], [], []>} : vector<8x50xf32>, vector<50x100xf32>, vector<8x100xf32> -> vector<8x100xf32>
    %c72 = arith.constant 72 : index
    %c0_10 = arith.constant 0 : index
    %10 = vector.load %arg2[%c72, %c0_10] : memref<536x100xf32, #tpu.memory_space<vmem>>, vector<5x100xf32>
    %cst_11 = arith.constant dense<0.000000e+00> : vector<8x100xf32>
    %11 = tpu.matmul %6, %10, %cst_11 {dimension_numbers = #tpu.dot_dimension_numbers<[1], [0], [0], [1], [0, 0, 1, 1], [], []>} : vector<8x5xf32>, vector<5x100xf32>, vector<8x100xf32> -> vector<8x100xf32>
    %12 = arith.addf %9, %11 : vector<8x100xf32>
    %c80 = arith.constant 80 : index
    %c0_12 = arith.constant 0 : index
    %13 = vector.load %arg2[%c80, %c0_12] : memref<536x100xf32, #tpu.memory_space<vmem>>, vector<1x100xf32>
    %14 = vector.broadcast %13 : vector<1x100xf32> to vector<8x100xf32>
    %15 = arith.addf %12, %14 : vector<8x100xf32>
    %cst_13 = arith.constant 0.000000e+00 : f32
    %16 = vector.broadcast %cst_13 : f32 to vector<8x100xf32>
    %17 = arith.maximumf %15, %16 : vector<8x100xf32>
    %c88 = arith.constant 88 : index
    %c0_14 = arith.constant 0 : index
    %18 = vector.load %arg2[%c88, %c0_14] : memref<536x100xf32, #tpu.memory_space<vmem>>, vector<100x100xf32>
    %cst_15 = arith.constant dense<0.000000e+00> : vector<8x100xf32>
    %19 = tpu.matmul %17, %18, %cst_15 {dimension_numbers = #tpu.dot_dimension_numbers<[1], [0], [0], [1], [0, 0, 1, 1], [], []>} : vector<8x100xf32>, vector<100x100xf32>, vector<8x100xf32> -> vector<8x100xf32>
    %cst_16 = arith.constant dense<0.000000e+00> : vector<100xf32>
    %20 = vector.multi_reduction <add>, %19, %cst_16 [0] : vector<8x100xf32> to vector<100xf32>
    %21 = vector.shape_cast %20 : vector<100xf32> to vector<1x100xf32>
    %22 = arith.mulf %19, %19 : vector<8x100xf32>
    %cst_17 = arith.constant dense<0.000000e+00> : vector<100xf32>
    %23 = vector.multi_reduction <add>, %22, %cst_17 [0] : vector<8x100xf32> to vector<100xf32>
    %24 = vector.shape_cast %23 : vector<100xf32> to vector<1x100xf32>
    %cst_18 = arith.constant 1.250000e-01 : f32
    %25 = vector.broadcast %cst_18 : f32 to vector<1x100xf32>
    %26 = arith.mulf %21, %25 : vector<1x100xf32>
    %cst_19 = arith.constant 1.250000e-01 : f32
    %27 = vector.broadcast %cst_19 : f32 to vector<1x100xf32>
    %28 = arith.mulf %24, %27 : vector<1x100xf32>
    %29 = arith.mulf %26, %26 : vector<1x100xf32>
    %30 = arith.subf %28, %29 : vector<1x100xf32>
    %cst_20 = arith.constant 0.000000e+00 : f32
    %31 = vector.broadcast %cst_20 : f32 to vector<1x100xf32>
    %32 = arith.maximumf %30, %31 : vector<1x100xf32>
    %c400 = arith.constant 400 : index
    %c0_21 = arith.constant 0 : index
    %33 = vector.load %arg2[%c400, %c0_21] : memref<536x100xf32, #tpu.memory_space<vmem>>, vector<1x100xf32>
    %c408 = arith.constant 408 : index
    %c0_22 = arith.constant 0 : index
    %34 = vector.load %arg2[%c408, %c0_22] : memref<536x100xf32, #tpu.memory_space<vmem>>, vector<1x100xf32>
    %35 = vector.broadcast %26 : vector<1x100xf32> to vector<8x100xf32>
    %36 = arith.subf %19, %35 : vector<8x100xf32>
    %cst_23 = arith.constant 9.99999974E-6 : f32
    %37 = vector.broadcast %cst_23 : f32 to vector<1x100xf32>
    %38 = arith.addf %32, %37 : vector<1x100xf32>
    %39 = math.rsqrt %38 : vector<1x100xf32>
    %40 = vector.broadcast %39 : vector<1x100xf32> to vector<8x100xf32>
    %41 = arith.mulf %36, %40 : vector<8x100xf32>
    %42 = vector.broadcast %33 : vector<1x100xf32> to vector<8x100xf32>
    %43 = arith.mulf %41, %42 : vector<8x100xf32>
    %44 = vector.broadcast %34 : vector<1x100xf32> to vector<8x100xf32>
    %45 = arith.addf %43, %44 : vector<8x100xf32>
    %cst_24 = arith.constant 0.000000e+00 : f32
    %46 = vector.broadcast %cst_24 : f32 to vector<8x100xf32>
    %47 = arith.maximumf %45, %46 : vector<8x100xf32>
    %c192 = arith.constant 192 : index
    %c0_25 = arith.constant 0 : index
    %48 = vector.load %arg2[%c192, %c0_25] : memref<536x100xf32, #tpu.memory_space<vmem>>, vector<100x100xf32>
    %cst_26 = arith.constant dense<0.000000e+00> : vector<8x100xf32>
    %49 = tpu.matmul %47, %48, %cst_26 {dimension_numbers = #tpu.dot_dimension_numbers<[1], [0], [0], [1], [0, 0, 1, 1], [], []>} : vector<8x100xf32>, vector<100x100xf32>, vector<8x100xf32> -> vector<8x100xf32>
    %cst_27 = arith.constant dense<0.000000e+00> : vector<100xf32>
    %50 = vector.multi_reduction <add>, %49, %cst_27 [0] : vector<8x100xf32> to vector<100xf32>
    %51 = vector.shape_cast %50 : vector<100xf32> to vector<1x100xf32>
    %52 = arith.mulf %49, %49 : vector<8x100xf32>
    %cst_28 = arith.constant dense<0.000000e+00> : vector<100xf32>
    %53 = vector.multi_reduction <add>, %52, %cst_28 [0] : vector<8x100xf32> to vector<100xf32>
    %54 = vector.shape_cast %53 : vector<100xf32> to vector<1x100xf32>
    %cst_29 = arith.constant 1.250000e-01 : f32
    %55 = vector.broadcast %cst_29 : f32 to vector<1x100xf32>
    %56 = arith.mulf %51, %55 : vector<1x100xf32>
    %cst_30 = arith.constant 1.250000e-01 : f32
    %57 = vector.broadcast %cst_30 : f32 to vector<1x100xf32>
    %58 = arith.mulf %54, %57 : vector<1x100xf32>
    %59 = arith.mulf %56, %56 : vector<1x100xf32>
    %60 = arith.subf %58, %59 : vector<1x100xf32>
    %cst_31 = arith.constant 0.000000e+00 : f32
    %61 = vector.broadcast %cst_31 : f32 to vector<1x100xf32>
    %62 = arith.maximumf %60, %61 : vector<1x100xf32>
    %c401 = arith.constant 401 : index
    %c0_32 = arith.constant 0 : index
    %63 = vector.load %arg2[%c401, %c0_32] : memref<536x100xf32, #tpu.memory_space<vmem>>, vector<1x100xf32>
    %c409 = arith.constant 409 : index
    %c0_33 = arith.constant 0 : index
    %64 = vector.load %arg2[%c409, %c0_33] : memref<536x100xf32, #tpu.memory_space<vmem>>, vector<1x100xf32>
    %65 = vector.broadcast %56 : vector<1x100xf32> to vector<8x100xf32>
    %66 = arith.subf %49, %65 : vector<8x100xf32>
    %cst_34 = arith.constant 9.99999974E-6 : f32
    %67 = vector.broadcast %cst_34 : f32 to vector<1x100xf32>
    %68 = arith.addf %62, %67 : vector<1x100xf32>
    %69 = math.rsqrt %68 : vector<1x100xf32>
    %70 = vector.broadcast %69 : vector<1x100xf32> to vector<8x100xf32>
    %71 = arith.mulf %66, %70 : vector<8x100xf32>
    %72 = vector.broadcast %63 : vector<1x100xf32> to vector<8x100xf32>
    %73 = arith.mulf %71, %72 : vector<8x100xf32>
    %74 = vector.broadcast %64 : vector<1x100xf32> to vector<8x100xf32>
    %75 = arith.addf %73, %74 : vector<8x100xf32>
    %cst_35 = arith.constant 0.000000e+00 : f32
    %76 = vector.broadcast %cst_35 : f32 to vector<8x100xf32>
    %77 = arith.maximumf %75, %76 : vector<8x100xf32>
    %c296 = arith.constant 296 : index
    %c0_36 = arith.constant 0 : index
    %78 = vector.load %arg2[%c296, %c0_36] : memref<536x100xf32, #tpu.memory_space<vmem>>, vector<100x100xf32>
    %cst_37 = arith.constant dense<0.000000e+00> : vector<8x100xf32>
    %79 = tpu.matmul %77, %78, %cst_37 {dimension_numbers = #tpu.dot_dimension_numbers<[1], [0], [0], [1], [0, 0, 1, 1], [], []>} : vector<8x100xf32>, vector<100x100xf32>, vector<8x100xf32> -> vector<8x100xf32>
    %cst_38 = arith.constant dense<0.000000e+00> : vector<100xf32>
    %80 = vector.multi_reduction <add>, %79, %cst_38 [0] : vector<8x100xf32> to vector<100xf32>
    %81 = vector.shape_cast %80 : vector<100xf32> to vector<1x100xf32>
    %82 = arith.mulf %79, %79 : vector<8x100xf32>
    %cst_39 = arith.constant dense<0.000000e+00> : vector<100xf32>
    %83 = vector.multi_reduction <add>, %82, %cst_39 [0] : vector<8x100xf32> to vector<100xf32>
    %84 = vector.shape_cast %83 : vector<100xf32> to vector<1x100xf32>
    %cst_40 = arith.constant 1.250000e-01 : f32
    %85 = vector.broadcast %cst_40 : f32 to vector<1x100xf32>
    %86 = arith.mulf %81, %85 : vector<1x100xf32>
    %cst_41 = arith.constant 1.250000e-01 : f32
    %87 = vector.broadcast %cst_41 : f32 to vector<1x100xf32>
    %88 = arith.mulf %84, %87 : vector<1x100xf32>
    %89 = arith.mulf %86, %86 : vector<1x100xf32>
    %90 = arith.subf %88, %89 : vector<1x100xf32>
    %cst_42 = arith.constant 0.000000e+00 : f32
    %91 = vector.broadcast %cst_42 : f32 to vector<1x100xf32>
    %92 = arith.maximumf %90, %91 : vector<1x100xf32>
    %c402 = arith.constant 402 : index
    %c0_43 = arith.constant 0 : index
    %93 = vector.load %arg2[%c402, %c0_43] : memref<536x100xf32, #tpu.memory_space<vmem>>, vector<1x100xf32>
    %c410 = arith.constant 410 : index
    %c0_44 = arith.constant 0 : index
    %94 = vector.load %arg2[%c410, %c0_44] : memref<536x100xf32, #tpu.memory_space<vmem>>, vector<1x100xf32>
    %95 = vector.broadcast %86 : vector<1x100xf32> to vector<8x100xf32>
    %96 = arith.subf %79, %95 : vector<8x100xf32>
    %cst_45 = arith.constant 9.99999974E-6 : f32
    %97 = vector.broadcast %cst_45 : f32 to vector<1x100xf32>
    %98 = arith.addf %92, %97 : vector<1x100xf32>
    %99 = math.rsqrt %98 : vector<1x100xf32>
    %100 = vector.broadcast %99 : vector<1x100xf32> to vector<8x100xf32>
    %101 = arith.mulf %96, %100 : vector<8x100xf32>
    %102 = vector.broadcast %93 : vector<1x100xf32> to vector<8x100xf32>
    %103 = arith.mulf %101, %102 : vector<8x100xf32>
    %104 = vector.broadcast %94 : vector<1x100xf32> to vector<8x100xf32>
    %105 = arith.addf %103, %104 : vector<8x100xf32>
    %cst_46 = arith.constant 0.000000e+00 : f32
    %106 = vector.broadcast %cst_46 : f32 to vector<8x100xf32>
    %107 = arith.maximumf %105, %106 : vector<8x100xf32>
    %c416 = arith.constant 416 : index
    %c0_47 = arith.constant 0 : index
    %108 = vector.load %arg2[%c416, %c0_47] : memref<536x100xf32, #tpu.memory_space<vmem>>, vector<100x5xf32>
    %cst_48 = arith.constant dense<0.000000e+00> : vector<8x5xf32>
    %109 = tpu.matmul %107, %108, %cst_48 {dimension_numbers = #tpu.dot_dimension_numbers<[1], [0], [0], [1], [0, 0, 1, 1], [], []>} : vector<8x100xf32>, vector<100x5xf32>, vector<8x5xf32> -> vector<8x5xf32>
    %c520 = arith.constant 520 : index
    %c0_49 = arith.constant 0 : index
    %110 = vector.load %arg2[%c520, %c0_49] : memref<536x100xf32, #tpu.memory_space<vmem>>, vector<1x5xf32>
    %111 = vector.broadcast %110 : vector<1x5xf32> to vector<8x5xf32>
    %112 = arith.addf %109, %111 : vector<8x5xf32>
    %cst_50 = arith.constant dense<0xFF800000> : vector<8xf32>
    %113 = vector.multi_reduction <maximumf>, %112, %cst_50 [1] : vector<8x5xf32> to vector<8xf32>
    %114 = vector.shape_cast %113 : vector<8xf32> to vector<8x1xf32>
    %115 = vector.broadcast %114 : vector<8x1xf32> to vector<8x5xf32>
    %116 = arith.subf %112, %115 : vector<8x5xf32>
    %117 = math.exp %116 : vector<8x5xf32>
    %118 = arith.divf %117, %117 : vector<8x5xf32>
    %c0_51 = arith.constant 0 : index
    %c0_52 = arith.constant 0 : index
    %119 = vector.load %arg5[%c0_51, %c0_52] : memref<8x5xf32, #tpu.memory_space<vmem>>, vector<8x5xf32>
    tpu.vector_store %arg5[%c0_51, %c0_52], %118 {strides = array<i32>} : memref<8x5xf32, #tpu.memory_space<vmem>>, vector<8x5xf32>,
    %120 = vector.broadcast %0 : f32 to vector<8x5xf32>
    %121 = arith.addf %118, %120 : vector<8x5xf32>
    %c528 = arith.constant 528 : index
    %c0_53 = arith.constant 0 : index
    %122 = vector.load %arg2[%c528, %c0_53] : memref<536x100xf32, #tpu.memory_space<vmem>>, vector<5x5xf32>
    %cst_54 = arith.constant dense<0.000000e+00> : vector<8x5xf32>
    %123 = tpu.matmul %121, %122, %cst_54 {dimension_numbers = #tpu.dot_dimension_numbers<[1], [0], [0], [1], [0, 0, 1, 1], [], []>} : vector<8x5xf32>, vector<5x5xf32>, vector<8x5xf32> -> vector<8x5xf32>
    %124 = vector.broadcast %0 : f32 to vector<8x5xf32>
    %125 = arith.subf %123, %124 : vector<8x5xf32>
    %c0_55 = arith.constant 0 : index
    %c0_56 = arith.constant 0 : index
    %126 = vector.load %arg4[%c0_55, %c0_56] : memref<8x5xf32, #tpu.memory_space<vmem>>, vector<8x5xf32>
    tpu.vector_store %arg4[%c0_55, %c0_56], %125 {strides = array<i32>} : memref<8x5xf32, #tpu.memory_space<vmem>>, vector<8x5xf32>,
    return
  }
}

</mosaic_0001>

<llo_original>
// kernel: custom-call.11
$region0: #{custom-call.11}
  %s0 = inlined_call_operand.vmem [shape: f32[5,5], index: 0, kind: input, shape index: {}]
  %s1 = inlined_call_operand.vmem [shape: f32[5,5], index: 1, kind: output, shape index: {0}]
  %s2 = inlined_call_operand.hbm [shape: s32[5], index: 2, kind: output, shape index: {1}]
  %s3 = inlined_call_operand.vmem [shape: s32[5], index: 3, kind: output, shape index: {2}]
  %4 = xla_tuple %s1, %s2, %s3
  $region1: #{custom-call.11} parent=0
    #allocation0 [shape = 'u8[4096]{0}', space=vmem, size = 0x1000, scoped, tag = 'operand span for operand 0']
    #allocation1 [shape = 'u8[4096]{0}', space=vmem, size = 0x1000, scoped, tag = 'operand span for operand 1']
    #allocation2 [shape = 'u8[4096]{0}', space=vmem, size = 0x1000, scoped, tag = 'operand span for operand 2']
    #allocation3 [shape = 'u8[512]{0}', space=vmem, size = 0x400, scoped, tag = 'packed  for operand 2']
    #allocation4 [shape = 's32[1]{0}', space=sflag, size = 0x4, scoped, tag = 'scoped memory for custom-call.11']
    #allocation5 [shape = 'u8[4096]{0}', space=vmem, size = 0x1000, scoped, tag = 'operand span for operand 3']
    #allocation6 [shape = 'u8[512]{0}', space=vmem, size = 0x400, scoped, tag = 'packed  for operand 3']
    #allocation7 [shape = 's32[5,128]{1,0}', space=vmem, size = 0x1000, scoped, tag = 'scratch for permutations']
    %5 = vsyncpa [#allocation4], 0
    %p7 = scmp.gt.s32.totalorder 8, 0
    // Predicated region
    $region2: #{custom-call.11} parent=1 // pred_check
      %p8 = pneg %p7
    $region3: #{custom-call.11} parent=1 // pred_check_branch
      %10 = sbr.rel (%p8) target = $region5
    $region4: #{custom-call.11} parent=1 // pred_region
      %s11 = sshra.s32 8, 3
      %p12 = scmp.gt.s32.totalorder %s11, 0
      // Predicated region
      $region6: #{custom-call.11} parent=4 // pred_check
        %p13 = pneg %p12
      $region7: #{custom-call.11} parent=4 // pred_check_branch
        %15 = sbr.rel (%p13) target = $region9
      $region8: #{custom-call.11} parent=4 // pred_region
        %s16 = ssub.s32 %s11, 1
        %s17 = smul.u32 %s16, 128
        %s18 = sshra.s32 %s17, 4
        %s19 = scalar_lea.vmem %s0, %s18
        %v20 = vld [vmem:[%s0] sm:$0xff]
        // While loop
        $region10: #{custom-call.11} parent=8 // loop_pre_header
          _
        $region11: #{custom-call.11} parent=8 // loop_header
          %s21 = sphi %s0, %s43
          %s22 = sphi [#allocation0], %s44
          %v23 = vphi %v20, %v45
          %s24 = ssub.s32 %s19, 64
          %p25 = scmp.gt.s32.totalorder %s21, %s24
        $region12: #{custom-call.11} parent=8 // loop_header_branch
          %27 = sbr.rel (%p25) target = $region16
        $region13: #{custom-call.11} parent=8 // loop_body
          %28 = vst [vmem:[%s22] sm:$0xff] %v23
          %v29 = vld [vmem:[%s21 + $0x8] sm:$0xff]
          %30 = vst [vmem:[%s22 + $0x8] sm:$0xff] %v29
          %v31 = vld [vmem:[%s21 + $0x10] sm:$0xff]
          %32 = vst [vmem:[%s22 + $0x10] sm:$0xff] %v31
          %v33 = vld [vmem:[%s21 + $0x18] sm:$0xff]
          %34 = vst [vmem:[%s22 + $0x18] sm:$0xff] %v33
          %v35 = vld [vmem:[%s21 + $0x20] sm:$0xff]
          %36 = vst [vmem:[%s22 + $0x20] sm:$0xff] %v35
          %v37 = vld [vmem:[%s21 + $0x28] sm:$0xff]
          %38 = vst [vmem:[%s22 + $0x28] sm:$0xff] %v37
          %v39 = vld [vmem:[%s21 + $0x30] sm:$0xff]
          %40 = vst [vmem:[%s22 + $0x30] sm:$0xff] %v39
          %v41 = vld [vmem:[%s21 + $0x38] sm:$0xff]
          %42 = vst [vmem:[%s22 + $0x38] sm:$0xff] %v41
        $region14: #{custom-call.11} parent=8 // loop_footer
          %s43 = scalar_lea.vmem %s21, 64
          %s44 = scalar_lea.vmem %s22, 64
          %v45 = vld [vmem:[%s21 + $0x40] sm:$0xff]
        $region15: #{custom-call.11} parent=8 // loop_footer_branch
          %46 = sbr.rel target = $region11
        $region16: #{custom-call.11} parent=8 // loop_exit
          _
        // While loop
        $region17: #{custom-call.11} parent=8 // loop_pre_header
          _
        $region18: #{custom-call.11} parent=8 // loop_header
          %s47 = sphi %s21, %s55
          %s48 = sphi %s22, %s56
          %v49 = vphi %v23, %v49
          %p50 = scmp.gt.s32.totalorder %s47, %s19
        $region19: #{custom-call.11} parent=8 // loop_header_branch
          %52 = sbr.rel (%p50) target = $region23
        $region20: #{custom-call.11} parent=8 // loop_body
          %v53 = vld [vmem:[%s47] sm:$0xff]
          %54 = vst [vmem:[%s48] sm:$0xff] %v53
        $region21: #{custom-call.11} parent=8 // loop_footer
          %s55 = scalar_lea.vmem %s47, 8
          %s56 = scalar_lea.vmem %s48, 8
        $region22: #{custom-call.11} parent=8 // loop_footer_branch
          %57 = sbr.rel target = $region18
        $region23: #{custom-call.11} parent=8 // loop_exit
          _
      $region9: #{custom-call.11} parent=4 // pred_fallthru
        _
      %s58 = sand.u32 8, 7
      %s59 = sshllo.u32 0, %s58
      %s60 = smul.u32 %s11, 128
      %s61 = sshra.s32 %s60, 4
      %s62 = scalar_lea.vmem [#allocation0], %s61
      %s63 = smul.u32 %s11, 128
      %s64 = sshra.s32 %s63, 4
      %s65 = scalar_lea.vmem %s0, %s64
      %v66 = vld [vmem:[%s65] sm:%s59]
      %67 = vst [vmem:[%s62] sm:%s59] %v66
    $region5: #{custom-call.11} parent=1 // pred_fallthru
      _
    %v68 = vld [vmem:[#allocation0] sm:$0xff]
    %69 = vst [vmem:[#allocation1] sm:$0xff] %v68
    %70 = vst [vmem:[#allocation2] sm:$0x1] 0
    %v71 = vlaneseq
    %v72 = vshrl.u32 %v71, 7
    %v73 = vmov %v72
    %75 = vst [vmem:[#allocation7] sm:$0xff] %v73
    loop: start=0, step=1, limit=5
    $region25: #{custom-call.11} parent=1 // loop_pre_header
      _
    $region26: #{custom-call.11} parent=1 // loop_header
      %s77 = sphi 0, %s81
      %p78 = scmp.ge.s32.totalorder %s77, 5
    $region27: #{custom-call.11} parent=1 // loop_header_branch
      %80 = sbr.rel (%p78) target = $region31
    $region28: #{custom-call.11} parent=1 // loop_body
      %v82 = vstv %s77
      %v83 = vlaneseq
      %v84 = vshrl.u32 %v83, 7
      %v85 = vmov %v84
      %v86 = vld [vmem:[#allocation1] sm:$0xff]
      %v87 = vand.u32 2147483647, %v86
      %v89 = vstv %s77
      %vm90 = vcmp.ge.s32.totalorder %v85, %v89
      %vm91 = vcmp.lt.s32.totalorder %v85, 5
      %vm92 = vmand %vm90, %vm91
      %vm93 = vcmp.lt.f32.partialorder -inf, %v87
      %vm94 = vmand %vm92, %vm93
      %v95 = vsel %vm94, %v85, %v82
      %v96 = vsel %vm94, %v87, -inf
      %v97 = vrot.slane %v96, 1
      %v98 = vrot.slane %v95, 1
      %vm99 = vcmp.ge.f32.partialorder %v97, %v96
      %v100 = vsel %vm99, %v97, %v96
      %v101 = vsel %vm99, %v98, %v95
      %v102 = vrot.slane %v97, 1
      %v103 = vrot.slane %v98, 1
      %vm104 = vcmp.ge.f32.partialorder %v102, %v100
      %v105 = vsel %vm104, %v102, %v100
      %v106 = vsel %vm104, %v103, %v101
      %v107 = vrot.slane %v102, 1
      %v108 = vrot.slane %v103, 1
      %vm109 = vcmp.ge.f32.partialorder %v107, %v105
      %v110 = vsel %vm109, %v107, %v105
      %v111 = vsel %vm109, %v108, %v106
      %v112 = vrot.slane %v107, 1
      %v113 = vrot.slane %v108, 1
      %vm114 = vcmp.ge.f32.partialorder %v112, %v110
      %v115 = vsel %vm114, %v112, %v110
      %v116 = vsel %vm114, %v113, %v111
      %v117 = vrot.slane %v112, 1
      %v118 = vrot.slane %v113, 1
      %vm119 = vcmp.ge.f32.partialorder %v117, %v115
      %v120 = vsel %vm119, %v117, %v115
      %v121 = vsel %vm119, %v118, %v116
      %v122 = vrot.slane %v117, 1
      %v123 = vrot.slane %v118, 1
      %vm124 = vcmp.ge.f32.partialorder %v122, %v120
      %v125 = vsel %vm124, %v122, %v120
      %v126 = vsel %vm124, %v123, %v121
      %v127 = vrot.slane %v122, 1
      %v128 = vrot.slane %v123, 1
      %vm129 = vcmp.ge.f32.partialorder %v127, %v125
      %v130 = vsel %vm129, %v127, %v125
      %v131 = vsel %vm129, %v128, %v126
      %s132 = ssub.s32 128, %s77
      %133 = vrot.lane.b32.xlu0 %v131, %s132
      %v134 = vpop.permute.xlu0 %133
      %s135 = vtos %v134
      %v136 = vstv %s77
      %v137 = vlaneseq
      %v138 = vand.u32 %v137, 127
      %vm139 = vcmp.eq.s32.totalorder %v138, %v136
      %v140 = vstv %s135
      %v141 = vld [vmem:[#allocation2] ss:$0 sm:$0xff]
      %v142 = vsel %vm139, %v140, %v141
      %143 = vst [vmem:[#allocation2] sm:$0x1] %v142
      %s144 = scalar_lea.vmem [#allocation1], %s77
      %s145 = scalar_lea.vmem [#allocation1], %s135
      %v146 = vld [vmem:[%s144] ss:$0 sm:$0xff]
      %v147 = vld [vmem:[%s145] ss:$0 sm:$0xff]
      %148 = vst [vmem:[%s145] sm:$0x1] %v146
      %149 = vst [vmem:[%s144] sm:$0x1] %v147
      %s150 = scalar_lea.vmem [#allocation7], %s77
      %s151 = scalar_lea.vmem [#allocation7], %s135
      %v152 = vld [vmem:[%s150] ss:$0 sm:$0xff]
      %v153 = vld [vmem:[%s151] ss:$0 sm:$0xff]
      %154 = vst [vmem:[%s151] sm:$0x1] %v152
      %155 = vst [vmem:[%s150] sm:$0x1] %v153
      %vm156 = vcmp.ne.f32.partialorder %v147, 0.0
      %vm157 = vmand %vm139, %vm156
      %v158 = vsel %vm157, %v147, 1.0
      %v159 = vlaneseq
      %v160 = vand.u32 %v159, 127
      %v161 = vstv %s77
      %vm162 = vcmp.gt.s32.totalorder %v160, %v161
      %v163 = vsel %vm162, %v147, 0.0
      %v164 = vlaneseq
      %v165 = vshrl.u32 %v164, 7
      %v166 = vmov %v165
      %v167 = vld [vmem:[#allocation1] sm:$0xff]
      %v169 = vstv %s77
      %vm170 = vcmp.gt.s32.totalorder %v166, %v169
      %v171 = vsel %vm170, %v158, 1.0
      %v172 = vrcp.pop %v171
      %v173 = vmul.f32 %v167, %v172
      %vm174 = vmand %vm170, %vm139
      %v175 = vsel %vm174, %v173, 0.0
      %176 = vadd.xlane.f32.xlu0 %v175
      %v177 = vpop.xlane.xlu0 %176
      %v178 = vmul.f32 %v177, %v163
      %v179 = vsub.f32 %v173, %v178
      %180 = vst [vmem:[#allocation1] sm:$0xff] %v179
    $region29: #{custom-call.11} parent=1 // loop_footer
      %s81 = sadd.s32 1, %s77
    $region30: #{custom-call.11} parent=1 // loop_footer_branch
      %76 = sbr.rel target = $region26
    $region31: #{custom-call.11} parent=1 // loop_exit
      _
    %v181 = vld [vmem:[#allocation7] sm:$0xff]
    %s182 = scalar_lea.vmem [#allocation7], 8
    %s183 = scalar_lea.vmem [#allocation7], 16
    %s184 = scalar_lea.vmem [#allocation7], 24
    %s185 = scalar_lea.vmem [#allocation7], 32
    %s186 = scalar_lea.vmem [#allocation7], 40
    %s187 = scalar_lea.vmem [#allocation7], 48
    %s188 = scalar_lea.vmem [#allocation7], 56
    %s189 = scalar_lea.vmem [#allocation7], 64
    %s190 = scalar_lea.vmem [#allocation7], 72
    %s191 = scalar_lea.vmem [#allocation7], 80
    %s192 = scalar_lea.vmem [#allocation7], 88
    %s193 = scalar_lea.vmem [#allocation7], 96
    %s194 = scalar_lea.vmem [#allocation7], 104
    %s195 = scalar_lea.vmem [#allocation7], 112
    %s196 = scalar_lea.vmem [#allocation7], 120
    %197 = vxpose.xlu0.b32.start [1/16] %v181, 128
    %198 = vxpose.xlu0.b32.cont [2/16] 0, 128
    %199 = vxpose.xlu0.b32.cont [3/16] 0, 128
    %200 = vxpose.xlu0.b32.cont [4/16] 0, 128
    %201 = vxpose.xlu0.b32.cont [5/16] 0, 128
    %202 = vxpose.xlu0.b32.cont [6/16] 0, 128
    %203 = vxpose.xlu0.b32.cont [7/16] 0, 128
    %204 = vxpose.xlu0.b32.cont [8/16] 0, 128
    %205 = vxpose.xlu0.b32.cont [9/16] 0, 128
    %206 = vxpose.xlu0.b32.cont [10/16] 0, 128
    %207 = vxpose.xlu0.b32.cont [11/16] 0, 128
    %208 = vxpose.xlu0.b32.cont [12/16] 0, 128
    %209 = vxpose.xlu0.b32.cont [13/16] 0, 128
    %210 = vxpose.xlu0.b32.cont [14/16] 0, 128
    %211 = vxpose.xlu0.b32.cont [15/16] 0, 128
    %212 = vxpose.xlu0.b32.end [16/16] 0, 128
    %v213 = vpop.trf.xlu0
    %v214 = vpop.trf.xlu0
    %v215 = vpop.trf.xlu0
    %v216 = vpop.trf.xlu0
    %v217 = vpop.trf.xlu0
    %v218 = vpop.trf.xlu0
    %v219 = vpop.trf.xlu0
    %v220 = vpop.trf.xlu0
    %v221 = vpop.trf.xlu0
    %v222 = vpop.trf.xlu0
    %v223 = vpop.trf.xlu0
    %v224 = vpop.trf.xlu0
    %v225 = vpop.trf.xlu0
    %v226 = vpop.trf.xlu0
    %v227 = vpop.trf.xlu0
    %v228 = vpop.trf.xlu0
    %229 = vst [vmem:[#allocation5] sm:$0x1] %v213
    %s231 = sshllo.u32 0, 1
    %v233 = vld [vmem:[#allocation2] sm:%s231]
    %s234 = sshllo.u32 0, 1
    %235 = vst [vmem:[#allocation3] sm:%s234] %v233
    %s237 = sshllo.u32 0, 1
    %v239 = vld [vmem:[#allocation5] sm:%s237]
    %s240 = sshllo.u32 0, 1
    %241 = vst [vmem:[#allocation6] sm:%s240] %v239
    %p243 = scmp.gt.s32.totalorder 8, 0
    // Predicated region
    $region32: #{custom-call.11} parent=1 // pred_check
      %p244 = pneg %p243
    $region33: #{custom-call.11} parent=1 // pred_check_branch
      %246 = sbr.rel (%p244) target = $region35
    $region34: #{custom-call.11} parent=1 // pred_region
      %s247 = sshra.s32 8, 3
      %p248 = scmp.gt.s32.totalorder %s247, 0
      // Predicated region
      $region36: #{custom-call.11} parent=34 // pred_check
        %p249 = pneg %p248
      $region37: #{custom-call.11} parent=34 // pred_check_branch
        %251 = sbr.rel (%p249) target = $region39
      $region38: #{custom-call.11} parent=34 // pred_region
        %s252 = ssub.s32 %s247, 1
        %s253 = smul.u32 %s252, 128
        %s254 = sshra.s32 %s253, 4
        %s255 = scalar_lea.vmem [#allocation1], %s254
        %v256 = vld [vmem:[#allocation1] sm:$0xff]
        // While loop
        $region40: #{custom-call.11} parent=38 // loop_pre_header
          _
        $region41: #{custom-call.11} parent=38 // loop_header
          %s257 = sphi [#allocation1], %s279
          %s258 = sphi %s1, %s280
          %v259 = vphi %v256, %v281
          %s260 = ssub.s32 %s255, 64
          %p261 = scmp.gt.s32.totalorder %s257, %s260
        $region42: #{custom-call.11} parent=38 // loop_header_branch
          %263 = sbr.rel (%p261) target = $region46
        $region43: #{custom-call.11} parent=38 // loop_body
          %264 = vst [vmem:[%s258] sm:$0xff] %v259
          %v265 = vld [vmem:[%s257 + $0x8] sm:$0xff]
          %266 = vst [vmem:[%s258 + $0x8] sm:$0xff] %v265
          %v267 = vld [vmem:[%s257 + $0x10] sm:$0xff]
          %268 = vst [vmem:[%s258 + $0x10] sm:$0xff] %v267
          %v269 = vld [vmem:[%s257 + $0x18] sm:$0xff]
          %270 = vst [vmem:[%s258 + $0x18] sm:$0xff] %v269
          %v271 = vld [vmem:[%s257 + $0x20] sm:$0xff]
          %272 = vst [vmem:[%s258 + $0x20] sm:$0xff] %v271
          %v273 = vld [vmem:[%s257 + $0x28] sm:$0xff]
          %274 = vst [vmem:[%s258 + $0x28] sm:$0xff] %v273
          %v275 = vld [vmem:[%s257 + $0x30] sm:$0xff]
          %276 = vst [vmem:[%s258 + $0x30] sm:$0xff] %v275
          %v277 = vld [vmem:[%s257 + $0x38] sm:$0xff]
          %278 = vst [vmem:[%s258 + $0x38] sm:$0xff] %v277
        $region44: #{custom-call.11} parent=38 // loop_footer
          %s279 = scalar_lea.vmem %s257, 64
          %s280 = scalar_lea.vmem %s258, 64
          %v281 = vld [vmem:[%s257 + $0x40] sm:$0xff]
        $region45: #{custom-call.11} parent=38 // loop_footer_branch
          %282 = sbr.rel target = $region41
        $region46: #{custom-call.11} parent=38 // loop_exit
          _
        // While loop
        $region47: #{custom-call.11} parent=38 // loop_pre_header
          _
        $region48: #{custom-call.11} parent=38 // loop_header
          %s283 = sphi %s257, %s291
          %s284 = sphi %s258, %s292
          %v285 = vphi %v259, %v285
          %p286 = scmp.gt.s32.totalorder %s283, %s255
        $region49: #{custom-call.11} parent=38 // loop_header_branch
          %288 = sbr.rel (%p286) target = $region53
        $region50: #{custom-call.11} parent=38 // loop_body
          %v289 = vld [vmem:[%s283] sm:$0xff]
          %290 = vst [vmem:[%s284] sm:$0xff] %v289
        $region51: #{custom-call.11} parent=38 // loop_footer
          %s291 = scalar_lea.vmem %s283, 8
          %s292 = scalar_lea.vmem %s284, 8
        $region52: #{custom-call.11} parent=38 // loop_footer_branch
          %293 = sbr.rel target = $region48
        $region53: #{custom-call.11} parent=38 // loop_exit
          _
      $region39: #{custom-call.11} parent=34 // pred_fallthru
        _
      %s294 = sand.u32 8, 7
      %s295 = sshllo.u32 0, %s294
      %s296 = smul.u32 %s247, 128
      %s297 = sshra.s32 %s296, 4
      %s298 = scalar_lea.vmem %s1, %s297
      %s299 = smul.u32 %s247, 128
      %s300 = sshra.s32 %s299, 4
      %s301 = scalar_lea.vmem [#allocation1], %s300
      %v302 = vld [vmem:[%s301] sm:%s295]
      %303 = vst [vmem:[%s298] sm:%s295] %v302
    $region35: #{custom-call.11} parent=1 // pred_fallthru
      _
    // Predicated region
    $region54: #{custom-call.11} parent=1 // pred_check
      _
    $region55: #{custom-call.11} parent=1 // pred_check_branch
      %305 = sbr.rel (0) target = $region57
    $region56: #{custom-call.11} parent=1 // pred_region
      %s307 = ssub.s32 16, 16
      %308 = vsyncadd [#allocation4], %s307
      %s309 = sshll.u32 [#allocation3], 4
      %s310 = int_to_ptr.vmem [resolvable:$true] %s309
      %312 = dma.vmem_to_hbm [thread:$0]  %s310, 16, %s2, [#allocation4]
    $region57: #{custom-call.11} parent=1 // pred_fallthru
      _
    // Predicated region
    $region58: #{custom-call.11} parent=1 // pred_check
      _
    $region59: #{custom-call.11} parent=1 // pred_check_branch
      %314 = sbr.rel (0) target = $region61
    $region60: #{custom-call.11} parent=1 // pred_region
      %p316 = scmp.gt.s32.totalorder 1, 0
      // Predicated region
      $region62: #{custom-call.11} parent=60 // pred_check
        %p317 = pneg %p316
      $region63: #{custom-call.11} parent=60 // pred_check_branch
        %319 = sbr.rel (%p317) target = $region65
      $region64: #{custom-call.11} parent=60 // pred_region
        %s320 = sshra.s32 1, 3
        %p321 = scmp.gt.s32.totalorder %s320, 0
        // Predicated region
        $region66: #{custom-call.11} parent=64 // pred_check
          %p322 = pneg %p321
        $region67: #{custom-call.11} parent=64 // pred_check_branch
          %324 = sbr.rel (%p322) target = $region69
        $region68: #{custom-call.11} parent=64 // pred_region
          %s325 = ssub.s32 %s320, 1
          %s326 = smul.u32 %s325, 128
          %s327 = sshra.s32 %s326, 4
          %s328 = scalar_lea.vmem [#allocation6], %s327
          %v329 = vld [vmem:[#allocation6] sm:$0xff]
          // While loop
          $region70: #{custom-call.11} parent=68 // loop_pre_header
            _
          $region71: #{custom-call.11} parent=68 // loop_header
            %s330 = sphi [#allocation6], %s352
            %s331 = sphi %s3, %s353
            %v332 = vphi %v329, %v354
            %s333 = ssub.s32 %s328, 64
            %p334 = scmp.gt.s32.totalorder %s330, %s333
          $region72: #{custom-call.11} parent=68 // loop_header_branch
            %336 = sbr.rel (%p334) target = $region76
          $region73: #{custom-call.11} parent=68 // loop_body
            %337 = vst [vmem:[%s331] sm:$0xff] %v332
            %v338 = vld [vmem:[%s330 + $0x8] sm:$0xff]
            %339 = vst [vmem:[%s331 + $0x8] sm:$0xff] %v338
            %v340 = vld [vmem:[%s330 + $0x10] sm:$0xff]
            %341 = vst [vmem:[%s331 + $0x10] sm:$0xff] %v340
            %v342 = vld [vmem:[%s330 + $0x18] sm:$0xff]
            %343 = vst [vmem:[%s331 + $0x18] sm:$0xff] %v342
            %v344 = vld [vmem:[%s330 + $0x20] sm:$0xff]
            %345 = vst [vmem:[%s331 + $0x20] sm:$0xff] %v344
            %v346 = vld [vmem:[%s330 + $0x28] sm:$0xff]
            %347 = vst [vmem:[%s331 + $0x28] sm:$0xff] %v346
            %v348 = vld [vmem:[%s330 + $0x30] sm:$0xff]
            %349 = vst [vmem:[%s331 + $0x30] sm:$0xff] %v348
            %v350 = vld [vmem:[%s330 + $0x38] sm:$0xff]
            %351 = vst [vmem:[%s331 + $0x38] sm:$0xff] %v350
          $region74: #{custom-call.11} parent=68 // loop_footer
            %s352 = scalar_lea.vmem %s330, 64
            %s353 = scalar_lea.vmem %s331, 64
            %v354 = vld [vmem:[%s330 + $0x40] sm:$0xff]
          $region75: #{custom-call.11} parent=68 // loop_footer_branch
            %355 = sbr.rel target = $region71
          $region76: #{custom-call.11} parent=68 // loop_exit
            _
          // While loop
          $region77: #{custom-call.11} parent=68 // loop_pre_header
            _
          $region78: #{custom-call.11} parent=68 // loop_header
            %s356 = sphi %s330, %s364
            %s357 = sphi %s331, %s365
            %v358 = vphi %v332, %v358
            %p359 = scmp.gt.s32.totalorder %s356, %s328
          $region79: #{custom-call.11} parent=68 // loop_header_branch
            %361 = sbr.rel (%p359) target = $region83
          $region80: #{custom-call.11} parent=68 // loop_body
            %v362 = vld [vmem:[%s356] sm:$0xff]
            %363 = vst [vmem:[%s357] sm:$0xff] %v362
          $region81: #{custom-call.11} parent=68 // loop_footer
            %s364 = scalar_lea.vmem %s356, 8
            %s365 = scalar_lea.vmem %s357, 8
          $region82: #{custom-call.11} parent=68 // loop_footer_branch
            %366 = sbr.rel target = $region78
          $region83: #{custom-call.11} parent=68 // loop_exit
            _
        $region69: #{custom-call.11} parent=64 // pred_fallthru
          _
        %s367 = sand.u32 1, 7
        %s368 = sshllo.u32 0, %s367
        %s369 = smul.u32 %s320, 128
        %s370 = sshra.s32 %s369, 4
        %s371 = scalar_lea.vmem %s3, %s370
        %s372 = smul.u32 %s320, 128
        %s373 = sshra.s32 %s372, 4
        %s374 = scalar_lea.vmem [#allocation6], %s373
        %v375 = vld [vmem:[%s374] sm:%s368]
        %376 = vst [vmem:[%s371] sm:%s368] %v375
      $region65: #{custom-call.11} parent=60 // pred_fallthru
        _
    $region61: #{custom-call.11} parent=1 // pred_fallthru
      _
    // Predicated region
    $region84: #{custom-call.11} parent=1 // pred_check
      _
    $region85: #{custom-call.11} parent=1 // pred_check_branch
      %378 = sbr.rel (0) target = $region87
    $region86: #{custom-call.11} parent=1 // pred_region
      %379 = dma.done [#allocation4], 16
    $region87: #{custom-call.11} parent=1 // pred_fallthru
      _
    // Predicated region
    $region88: #{custom-call.11} parent=1 // pred_check
      _
    $region89: #{custom-call.11} parent=1 // pred_check_branch
      %381 = sbr.rel (0) target = $region91
    $region90: #{custom-call.11} parent=1 // pred_region
      _
    $region91: #{custom-call.11} parent=1 // pred_fallthru
      _
    %382 = vsyncpa [#allocation4], 1

// kernel: custom-call.13
$region0: #{custom-call.13}
  %s0 = inlined_call_operand.vmem [shape: f32[1,5,5], index: 0, kind: input, shape index: {}]
  %s1 = inlined_call_operand.vmem [shape: f32[1,5,5], index: 1, kind: output, shape index: {}]
  $region1: #{custom-call.13} parent=0
    #allocation0 [shape = 'u8[4096]{0}', space=vmem, size = 0x1000, scoped, tag = 'operand span for operand 0']
    #allocation1 [shape = 'u8[4096]{0}', space=vmem, size = 0x1000, scoped, tag = 'operand span for operand 1']
    #allocation2 [shape = 'f32[5,5]{1,0}', space=vmem, size = 0x1000, scoped, tag = 'rescaled input a']
    // Predicated region
    $region2: #{custom-call.13} parent=1 // pred_check
      _
    $region3: #{custom-call.13} parent=1 // pred_check_branch
      %3 = sbr.rel (0) target = $region5
    $region4: #{custom-call.13} parent=1 // pred_region
      // Predicated region
      $region6: #{custom-call.13} parent=4 // pred_check
        _
      $region7: #{custom-call.13} parent=4 // pred_check_branch
        %5 = sbr.rel (0) target = $region9
      $region8: #{custom-call.13} parent=4 // pred_region
        // Predicated region
        $region21: #{custom-call.13} parent=8 // pred_check
          _
        $region22: #{custom-call.13} parent=8 // pred_check_branch
          %20 = sbr.rel (0) target = $region24
        $region23: #{custom-call.13} parent=8 // pred_region
          loop: start=0, step=1, limit=1
          $region25: #{custom-call.13} parent=23 // loop_pre_header
            _
          $region26: #{custom-call.13} parent=23 // loop_header
            %s22 = sphi 0, %s26
            %p23 = scmp.ge.s32.totalorder %s22, 1
            %s27 = sphi %s0, %s0
            %s28 = sphi [#allocation0], [#allocation0]
          $region27: #{custom-call.13} parent=23 // loop_header_branch
            %25 = sbr.rel (%p23) target = $region31
          $region28: #{custom-call.13} parent=23 // loop_body
            %v29 = vld [vmem:[%s27] sm:$0xff]
            %30 = vst [vmem:[%s28] sm:$0xff] %v29
          $region29: #{custom-call.13} parent=23 // loop_footer
            %s26 = sadd.s32 1, %s22
          $region30: #{custom-call.13} parent=23 // loop_footer_branch
            %21 = sbr.rel target = $region26
          $region31: #{custom-call.13} parent=23 // loop_exit
            _
        $region24: #{custom-call.13} parent=8 // pred_fallthru
          _
        // Predicated region
        $region32: #{custom-call.13} parent=8 // pred_check
          _
        $region33: #{custom-call.13} parent=8 // pred_check_branch
          %32 = sbr.rel target = $region35
        $region34: #{custom-call.13} parent=8 // pred_region
          _
        $region35: #{custom-call.13} parent=8 // pred_fallthru
          _
      $region9: #{custom-call.13} parent=4 // pred_fallthru
        _
      // Predicated region
      $region10: #{custom-call.13} parent=4 // pred_check
        _
      $region11: #{custom-call.13} parent=4 // pred_check_branch
        %7 = sbr.rel target = $region13
      $region12: #{custom-call.13} parent=4 // pred_region
        loop: start=0, step=1, limit=1
        $region14: #{custom-call.13} parent=12 // loop_pre_header
          _
        $region15: #{custom-call.13} parent=12 // loop_header
          %s10 = sphi 0, %s14
          %p11 = scmp.ge.s32.totalorder %s10, 1
          %s15 = sphi %s0, %s0
          %s16 = sphi [#allocation0], [#allocation0]
        $region16: #{custom-call.13} parent=12 // loop_header_branch
          %13 = sbr.rel (%p11) target = $region20
        $region17: #{custom-call.13} parent=12 // loop_body
          %v17 = vld [vmem:[%s15] sm:$0xff]
          %18 = vst [vmem:[%s16] sm:$0xff] %v17
        $region18: #{custom-call.13} parent=12 // loop_footer
          %s14 = sadd.s32 1, %s10
        $region19: #{custom-call.13} parent=12 // loop_footer_branch
          %9 = sbr.rel target = $region15
        $region20: #{custom-call.13} parent=12 // loop_exit
          _
      $region13: #{custom-call.13} parent=4 // pred_fallthru
        _
    $region5: #{custom-call.13} parent=1 // pred_fallthru
      _
    %33 = vnop
    %v34 = vlaneseq
    %v35 = vand.u32 %v34, 127
    %vm36 = vcmp.lt.s32.totalorder %v35, 5
    %v37 = vlaneseq
    %v38 = vshrl.u32 %v37, 7
    %vm40 = vcmp.eq.s32.totalorder %v38, %v35
    %v41 = vld [vmem:[#allocation0] sm:$0xff]
    %v42 = vsel %vm40, %v41, 0.0
    %43 = vadd.xlane.f32.xlu0 %v42
    %v44 = vpop.xlane.xlu0 %43
    %vm45 = vcmp.ge.s32.totalorder %v38, %v35
    %vm46 = vmand %vm45, %vm36
    %v47 = vsel %vm46, %v41, 0.0
    %v48 = vrcp.pop %v44
    %v49 = vmul.f32 %v47, %v48
    %50 = vst [vmem:[#allocation2] sm:$0xff] %v49
    %v51 = vlaneseq
    %v52 = vand.u32 %v51, 127
    %v53 = vlaneseq
    %v54 = vshrl.u32 %v53, 7
    %vm56 = vcmp.eq.s32.totalorder %v52, %v54
    %v57 = vlaneseq
    %v58 = vand.u32 %v57, 127
    %vm59 = vcmp.eq.s32.totalorder %v58, 0
    %v60 = vsel %vm59, 1.0, -1.0
    %v61 = vsel %vm56, %v60, 0.0
    %s62 = scalar_lea.vmem [#allocation2], 1
    %v63 = vld [vmem:[%s62] ss:$0 sm:$0xff]
    %v64 = vxor.u32 %v63, 2147483648
    %v65 = vlaneseq
    %v66 = vand.u32 %v65, 127
    %vm67 = vcmp.eq.s32.totalorder %v66, 1
    %v68 = vmul.f32 %v64, %v61
    %69 = vadd.xlane.f32.xlu0 %v68
    %v70 = vpop.xlane.xlu0 %69
    %v71 = vsel %vm67, %v70, %v61
    %s72 = scalar_lea.vmem [#allocation2], 2
    %v73 = vld [vmem:[%s72] ss:$0 sm:$0xff]
    %v74 = vxor.u32 %v73, 2147483648
    %v75 = vlaneseq
    %v76 = vand.u32 %v75, 127
    %vm77 = vcmp.eq.s32.totalorder %v76, 2
    %v78 = vmul.f32 %v74, %v71
    %79 = vadd.xlane.f32.xlu0 %v78
    %v80 = vpop.xlane.xlu0 %79
    %v81 = vsel %vm77, %v80, %v71
    %s82 = scalar_lea.vmem [#allocation2], 3
    %v83 = vld [vmem:[%s82] ss:$0 sm:$0xff]
    %v84 = vxor.u32 %v83, 2147483648
    %v85 = vlaneseq
    %v86 = vand.u32 %v85, 127
    %vm87 = vcmp.eq.s32.totalorder %v86, 3
    %v88 = vmul.f32 %v84, %v81
    %89 = vadd.xlane.f32.xlu0 %v88
    %v90 = vpop.xlane.xlu0 %89
    %v91 = vsel %vm87, %v90, %v81
    %s92 = scalar_lea.vmem [#allocation2], 4
    %v93 = vld [vmem:[%s92] ss:$0 sm:$0xff]
    %v94 = vxor.u32 %v93, 2147483648
    %v95 = vlaneseq
    %v96 = vand.u32 %v95, 127
    %vm97 = vcmp.eq.s32.totalorder %v96, 4
    %v98 = vmul.f32 %v94, %v91
    %99 = vadd.xlane.f32.xlu0 %v98
    %v100 = vpop.xlane.xlu0 %99
    %v101 = vsel %vm97, %v100, %v91
    %v102 = vrcp.pop %v44
    %v103 = vmul.f32 %v101, %v102
    %vm104 = vweird.f32 %v44
    %v105 = vsel %vm104, %v101, %v103
    %106 = vst [vmem:[#allocation1] sm:$0xff] %v105
    // Predicated region
    $region36: #{custom-call.13} parent=1 // pred_check
      _
    $region37: #{custom-call.13} parent=1 // pred_check_branch
      %108 = sbr.rel (0) target = $region39
    $region38: #{custom-call.13} parent=1 // pred_region
      // Predicated region
      $region40: #{custom-call.13} parent=38 // pred_check
        _
      $region41: #{custom-call.13} parent=38 // pred_check_branch
        %110 = sbr.rel (0) target = $region43
      $region42: #{custom-call.13} parent=38 // pred_region
        // Predicated region
        $region55: #{custom-call.13} parent=42 // pred_check
          _
        $region56: #{custom-call.13} parent=42 // pred_check_branch
          %125 = sbr.rel (0) target = $region58
        $region57: #{custom-call.13} parent=42 // pred_region
          loop: start=0, step=1, limit=1
          $region59: #{custom-call.13} parent=57 // loop_pre_header
            _
          $region60: #{custom-call.13} parent=57 // loop_header
            %s127 = sphi 0, %s131
            %p128 = scmp.ge.s32.totalorder %s127, 1
            %s132 = sphi [#allocation1], [#allocation1]
            %s133 = sphi %s1, %s1
          $region61: #{custom-call.13} parent=57 // loop_header_branch
            %130 = sbr.rel (%p128) target = $region65
          $region62: #{custom-call.13} parent=57 // loop_body
            %v134 = vld [vmem:[%s132] sm:$0xff]
            %135 = vst [vmem:[%s133] sm:$0xff] %v134
          $region63: #{custom-call.13} parent=57 // loop_footer
            %s131 = sadd.s32 1, %s127
          $region64: #{custom-call.13} parent=57 // loop_footer_branch
            %126 = sbr.rel target = $region60
          $region65: #{custom-call.13} parent=57 // loop_exit
            _
        $region58: #{custom-call.13} parent=42 // pred_fallthru
          _
        // Predicated region
        $region66: #{custom-call.13} parent=42 // pred_check
          _
        $region67: #{custom-call.13} parent=42 // pred_check_branch
          %137 = sbr.rel target = $region69
        $region68: #{custom-call.13} parent=42 // pred_region
          _
        $region69: #{custom-call.13} parent=42 // pred_fallthru
          _
      $region43: #{custom-call.13} parent=38 // pred_fallthru
        _
      // Predicated region
      $region44: #{custom-call.13} parent=38 // pred_check
        _
      $region45: #{custom-call.13} parent=38 // pred_check_branch
        %112 = sbr.rel target = $region47
      $region46: #{custom-call.13} parent=38 // pred_region
        loop: start=0, step=1, limit=1
        $region48: #{custom-call.13} parent=46 // loop_pre_header
          _
        $region49: #{custom-call.13} parent=46 // loop_header
          %s115 = sphi 0, %s119
          %p116 = scmp.ge.s32.totalorder %s115, 1
          %s120 = sphi [#allocation1], [#allocation1]
          %s121 = sphi %s1, %s1
        $region50: #{custom-call.13} parent=46 // loop_header_branch
          %118 = sbr.rel (%p116) target = $region54
        $region51: #{custom-call.13} parent=46 // loop_body
          %v122 = vld [vmem:[%s120] sm:$0xff]
          %123 = vst [vmem:[%s121] sm:$0xff] %v122
        $region52: #{custom-call.13} parent=46 // loop_footer
          %s119 = sadd.s32 1, %s115
        $region53: #{custom-call.13} parent=46 // loop_footer_branch
          %114 = sbr.rel target = $region49
        $region54: #{custom-call.13} parent=46 // loop_exit
          _
      $region47: #{custom-call.13} parent=38 // pred_fallthru
        _
    $region39: #{custom-call.13} parent=1 // pred_fallthru
      _
    %138 = vnop

// kernel: custom-call.12
$region0: #{custom-call.12}
  %s0 = inlined_call_operand.vmem [shape: f32[1,5,5], index: 0, kind: input, shape index: {}]
  %s1 = inlined_call_operand.vmem [shape: f32[1,5,5], index: 1, kind: output, shape index: {}]
  $region1: #{custom-call.12} parent=0
    #allocation0 [shape = 'u8[4096]{0}', space=vmem, size = 0x1000, scoped, tag = 'operand span for operand 0']
    #allocation1 [shape = 'u8[4096]{0}', space=vmem, size = 0x1000, scoped, tag = 'operand span for operand 1']
    #allocation2 [shape = 'f32[5,5]{1,0}', space=vmem, size = 0x1000, scoped, tag = 'rescaled input a']
    // Predicated region
    $region2: #{custom-call.12} parent=1 // pred_check
      _
    $region3: #{custom-call.12} parent=1 // pred_check_branch
      %3 = sbr.rel (0) target = $region5
    $region4: #{custom-call.12} parent=1 // pred_region
      // Predicated region
      $region6: #{custom-call.12} parent=4 // pred_check
        _
      $region7: #{custom-call.12} parent=4 // pred_check_branch
        %5 = sbr.rel (0) target = $region9
      $region8: #{custom-call.12} parent=4 // pred_region
        // Predicated region
        $region21: #{custom-call.12} parent=8 // pred_check
          _
        $region22: #{custom-call.12} parent=8 // pred_check_branch
          %20 = sbr.rel (0) target = $region24
        $region23: #{custom-call.12} parent=8 // pred_region
          loop: start=0, step=1, limit=1
          $region25: #{custom-call.12} parent=23 // loop_pre_header
            _
          $region26: #{custom-call.12} parent=23 // loop_header
            %s22 = sphi 0, %s26
            %p23 = scmp.ge.s32.totalorder %s22, 1
            %s27 = sphi %s0, %s0
            %s28 = sphi [#allocation0], [#allocation0]
          $region27: #{custom-call.12} parent=23 // loop_header_branch
            %25 = sbr.rel (%p23) target = $region31
          $region28: #{custom-call.12} parent=23 // loop_body
            %v29 = vld [vmem:[%s27] sm:$0xff]
            %30 = vst [vmem:[%s28] sm:$0xff] %v29
          $region29: #{custom-call.12} parent=23 // loop_footer
            %s26 = sadd.s32 1, %s22
          $region30: #{custom-call.12} parent=23 // loop_footer_branch
            %21 = sbr.rel target = $region26
          $region31: #{custom-call.12} parent=23 // loop_exit
            _
        $region24: #{custom-call.12} parent=8 // pred_fallthru
          _
        // Predicated region
        $region32: #{custom-call.12} parent=8 // pred_check
          _
        $region33: #{custom-call.12} parent=8 // pred_check_branch
          %32 = sbr.rel target = $region35
        $region34: #{custom-call.12} parent=8 // pred_region
          _
        $region35: #{custom-call.12} parent=8 // pred_fallthru
          _
      $region9: #{custom-call.12} parent=4 // pred_fallthru
        _
      // Predicated region
      $region10: #{custom-call.12} parent=4 // pred_check
        _
      $region11: #{custom-call.12} parent=4 // pred_check_branch
        %7 = sbr.rel target = $region13
      $region12: #{custom-call.12} parent=4 // pred_region
        loop: start=0, step=1, limit=1
        $region14: #{custom-call.12} parent=12 // loop_pre_header
          _
        $region15: #{custom-call.12} parent=12 // loop_header
          %s10 = sphi 0, %s14
          %p11 = scmp.ge.s32.totalorder %s10, 1
          %s15 = sphi %s0, %s0
          %s16 = sphi [#allocation0], [#allocation0]
        $region16: #{custom-call.12} parent=12 // loop_header_branch
          %13 = sbr.rel (%p11) target = $region20
        $region17: #{custom-call.12} parent=12 // loop_body
          %v17 = vld [vmem:[%s15] sm:$0xff]
          %18 = vst [vmem:[%s16] sm:$0xff] %v17
        $region18: #{custom-call.12} parent=12 // loop_footer
          %s14 = sadd.s32 1, %s10
        $region19: #{custom-call.12} parent=12 // loop_footer_branch
          %9 = sbr.rel target = $region15
        $region20: #{custom-call.12} parent=12 // loop_exit
          _
      $region13: #{custom-call.12} parent=4 // pred_fallthru
        _
    $region5: #{custom-call.12} parent=1 // pred_fallthru
      _
    %33 = vnop
    %v34 = vlaneseq
    %v35 = vand.u32 %v34, 127
    %vm36 = vcmp.lt.s32.totalorder %v35, 5
    %v37 = vlaneseq
    %v38 = vshrl.u32 %v37, 7
    %vm40 = vcmp.eq.s32.totalorder %v38, %v35
    %v41 = vld [vmem:[#allocation0] sm:$0xff]
    %v42 = vsel %vm40, %v41, 0.0
    %43 = vadd.xlane.f32.xlu0 %v42
    %v44 = vpop.xlane.xlu0 %43
    %vm45 = vcmp.le.s32.totalorder %v38, %v35
    %vm46 = vmand %vm45, %vm36
    %v47 = vsel %vm46, %v41, 0.0
    %v48 = vrcp.pop %v44
    %v49 = vmul.f32 %v47, %v48
    %50 = vst [vmem:[#allocation2] sm:$0xff] %v49
    %v51 = vlaneseq
    %v52 = vand.u32 %v51, 127
    %v53 = vlaneseq
    %v54 = vshrl.u32 %v53, 7
    %vm56 = vcmp.eq.s32.totalorder %v52, %v54
    %v57 = vlaneseq
    %v58 = vand.u32 %v57, 127
    %vm59 = vcmp.eq.s32.totalorder %v58, 4
    %v60 = vsel %vm59, 1.0, -1.0
    %v61 = vsel %vm56, %v60, 0.0
    %s62 = scalar_lea.vmem [#allocation2], 3
    %v63 = vld [vmem:[%s62] ss:$0 sm:$0xff]
    %v64 = vxor.u32 %v63, 2147483648
    %v65 = vlaneseq
    %v66 = vand.u32 %v65, 127
    %vm67 = vcmp.eq.s32.totalorder %v66, 3
    %v68 = vmul.f32 %v64, %v61
    %69 = vadd.xlane.f32.xlu0 %v68
    %v70 = vpop.xlane.xlu0 %69
    %v71 = vsel %vm67, %v70, %v61
    %s72 = scalar_lea.vmem [#allocation2], 2
    %v73 = vld [vmem:[%s72] ss:$0 sm:$0xff]
    %v74 = vxor.u32 %v73, 2147483648
    %v75 = vlaneseq
    %v76 = vand.u32 %v75, 127
    %vm77 = vcmp.eq.s32.totalorder %v76, 2
    %v78 = vmul.f32 %v74, %v71
    %79 = vadd.xlane.f32.xlu0 %v78
    %v80 = vpop.xlane.xlu0 %79
    %v81 = vsel %vm77, %v80, %v71
    %s82 = scalar_lea.vmem [#allocation2], 1
    %v83 = vld [vmem:[%s82] ss:$0 sm:$0xff]
    %v84 = vxor.u32 %v83, 2147483648
    %v85 = vlaneseq
    %v86 = vand.u32 %v85, 127
    %vm87 = vcmp.eq.s32.totalorder %v86, 1
    %v88 = vmul.f32 %v84, %v81
    %89 = vadd.xlane.f32.xlu0 %v88
    %v90 = vpop.xlane.xlu0 %89
    %v91 = vsel %vm87, %v90, %v81
    %v92 = vld [vmem:[#allocation2] ss:$0 sm:$0xff]
    %v93 = vxor.u32 %v92, 2147483648
    %v94 = vlaneseq
    %v95 = vand.u32 %v94, 127
    %vm96 = vcmp.eq.s32.totalorder %v95, 0
    %v97 = vmul.f32 %v93, %v91
    %98 = vadd.xlane.f32.xlu0 %v97
    %v99 = vpop.xlane.xlu0 %98
    %v100 = vsel %vm96, %v99, %v91
    %v101 = vrcp.pop %v44
    %v102 = vmul.f32 %v100, %v101
    %vm103 = vweird.f32 %v44
    %v104 = vsel %vm103, %v100, %v102
    %105 = vst [vmem:[#allocation1] sm:$0xff] %v104
    // Predicated region
    $region36: #{custom-call.12} parent=1 // pred_check
      _
    $region37: #{custom-call.12} parent=1 // pred_check_branch
      %107 = sbr.rel (0) target = $region39
    $region38: #{custom-call.12} parent=1 // pred_region
      // Predicated region
      $region40: #{custom-call.12} parent=38 // pred_check
        _
      $region41: #{custom-call.12} parent=38 // pred_check_branch
        %109 = sbr.rel (0) target = $region43
      $region42: #{custom-call.12} parent=38 // pred_region
        // Predicated region
        $region55: #{custom-call.12} parent=42 // pred_check
          _
        $region56: #{custom-call.12} parent=42 // pred_check_branch
          %124 = sbr.rel (0) target = $region58
        $region57: #{custom-call.12} parent=42 // pred_region
          loop: start=0, step=1, limit=1
          $region59: #{custom-call.12} parent=57 // loop_pre_header
            _
          $region60: #{custom-call.12} parent=57 // loop_header
            %s126 = sphi 0, %s130
            %p127 = scmp.ge.s32.totalorder %s126, 1
            %s131 = sphi [#allocation1], [#allocation1]
            %s132 = sphi %s1, %s1
          $region61: #{custom-call.12} parent=57 // loop_header_branch
            %129 = sbr.rel (%p127) target = $region65
          $region62: #{custom-call.12} parent=57 // loop_body
            %v133 = vld [vmem:[%s131] sm:$0xff]
            %134 = vst [vmem:[%s132] sm:$0xff] %v133
          $region63: #{custom-call.12} parent=57 // loop_footer
            %s130 = sadd.s32 1, %s126
          $region64: #{custom-call.12} parent=57 // loop_footer_branch
            %125 = sbr.rel target = $region60
          $region65: #{custom-call.12} parent=57 // loop_exit
            _
        $region58: #{custom-call.12} parent=42 // pred_fallthru
          _
        // Predicated region
        $region66: #{custom-call.12} parent=42 // pred_check
          _
        $region67: #{custom-call.12} parent=42 // pred_check_branch
          %136 = sbr.rel target = $region69
        $region68: #{custom-call.12} parent=42 // pred_region
          _
        $region69: #{custom-call.12} parent=42 // pred_fallthru
          _
      $region43: #{custom-call.12} parent=38 // pred_fallthru
        _
      // Predicated region
      $region44: #{custom-call.12} parent=38 // pred_check
        _
      $region45: #{custom-call.12} parent=38 // pred_check_branch
        %111 = sbr.rel target = $region47
      $region46: #{custom-call.12} parent=38 // pred_region
        loop: start=0, step=1, limit=1
        $region48: #{custom-call.12} parent=46 // loop_pre_header
          _
        $region49: #{custom-call.12} parent=46 // loop_header
          %s114 = sphi 0, %s118
          %p115 = scmp.ge.s32.totalorder %s114, 1
          %s119 = sphi [#allocation1], [#allocation1]
          %s120 = sphi %s1, %s1
        $region50: #{custom-call.12} parent=46 // loop_header_branch
          %117 = sbr.rel (%p115) target = $region54
        $region51: #{custom-call.12} parent=46 // loop_body
          %v121 = vld [vmem:[%s119] sm:$0xff]
          %122 = vst [vmem:[%s120] sm:$0xff] %v121
        $region52: #{custom-call.12} parent=46 // loop_footer
          %s118 = sadd.s32 1, %s114
        $region53: #{custom-call.12} parent=46 // loop_footer_branch
          %113 = sbr.rel target = $region49
        $region54: #{custom-call.12} parent=46 // loop_exit
          _
      $region47: #{custom-call.12} parent=38 // pred_fallthru
        _
    $region39: #{custom-call.12} parent=1 // pred_fallthru
      _
    %137 = vnop

// kernel: lgn_forward.1
$region0: #{lgn_forward.1}
  #allocation0 [shape = 'u32[]', space=smem, size = 0x4, offset = 0x4, fixed_abs, tag = 'smem constant byte address 0x4 - core index']
  #allocation1 [shape = 'u32[144,128]{1,0:T(1,128)}', space=vmem, size = 0x12000, scoped, tag = 'internal scratch']
  #allocation2 [shape = 'f32[1,1]{1,0:T(1,128)S(6)}', space=smem, size = 0x200, scoped, tag = 'scoped memory for lgn_forward.1']
  %s0 = inlined_call_operand.vmem [shape: f32[8,50], index: 0, kind: input, shape index: {}]
  %s1 = inlined_call_operand.vmem [shape: f32[8,5], index: 1, kind: input, shape index: {}]
  %s2 = inlined_call_operand.vmem [shape: f32[536,100], index: 2, kind: input, shape index: {}]
  %s3 = inlined_call_operand.<no memory space> [shape: f32[1,1], index: 3, kind: input, shape index: {}]
  %s4 = inlined_call_operand.hbm [shape: f32[8,5], index: 4, kind: output, shape index: {0}]
  %s5 = inlined_call_operand.hbm [shape: f32[8,5], index: 5, kind: output, shape index: {1}]
  %6 = xla_tuple %s4, %s5
  %s7 = sld [smem:[#allocation0]]
  $region34: #{lgn_forward.1} parent=0
    _
  %s9 = ssub.s32 1, %s7
  %s10 = scalar_select 0, %s9, %s7
  %11 = sst [smem:[#allocation2]] %s3
  $region1: #{lgn_forward.1} parent=0
    #allocation3 [shape = 'u8[4096]{0}', space=vmem, size = 0x1000, scoped, tag = 'output window, operand 0, single buffered']
    #allocation4 [shape = 's32[1]{0}', space=sflag, size = 0x4, scoped, tag = 'scoped memory for lgn_forward.1']
    #allocation5 [shape = 'u8[4096]{0}', space=vmem, size = 0x1000, scoped, tag = 'output window, operand 1, single buffered']
    #allocation6 [shape = 's32[1]{0}', space=sflag, size = 0x4, scoped, tag = 'scoped memory for lgn_forward.1']
    %12 = vsyncpa [#allocation4], 0
    %13 = vsyncpa [#allocation6], 0
    // Predicated region
    $region2: #{lgn_forward.1} parent=1 // pred_check
      _
    $region3: #{lgn_forward.1} parent=1 // pred_check_branch
      %15 = sbr.rel (0) target = $region5
    $region4: #{lgn_forward.1} parent=1 // pred_region
      _
    $region5: #{lgn_forward.1} parent=1 // pred_fallthru
      _
    // Predicated region
    $region6: #{lgn_forward.1} parent=1 // pred_check
      _
    $region7: #{lgn_forward.1} parent=1 // pred_check_branch
      %17 = sbr.rel (0) target = $region9
    $region8: #{lgn_forward.1} parent=1 // pred_region
      _
    $region9: #{lgn_forward.1} parent=1 // pred_fallthru
      _
    // Predicated region
    $region10: #{lgn_forward.1} parent=1 // pred_check
      _
    $region11: #{lgn_forward.1} parent=1 // pred_check_branch
      %19 = sbr.rel (0) target = $region13
    $region12: #{lgn_forward.1} parent=1 // pred_region
      _
    $region13: #{lgn_forward.1} parent=1 // pred_fallthru
      _
    // Predicated region
    $region14: #{lgn_forward.1} parent=1 // pred_check
      _
    $region15: #{lgn_forward.1} parent=1 // pred_check_branch
      %21 = sbr.rel (0) target = $region17
    $region16: #{lgn_forward.1} parent=1 // pred_region
      _
    $region17: #{lgn_forward.1} parent=1 // pred_fallthru
      _
    %s22 = sld [smem:[#allocation2]]
    %v23 = vld [vmem:[%s1] sm:$0xff]
    %v24 = vld [vmem:[%s2] sm:$0x1f]
    %v25 = vld [vmem:[%s2 + $0x8] sm:$0x1]
    %v26 = vlaneseq
    %v27 = vshrl.u32 %v26, 7
    %v28 = vsub.s32 0, %v27
    %v29 = vrot.slane %v25, %v28
    %vm30 = vcmask 39936
    %v32 = vsel %vm30, %v23, 0
    %vm34 = vcmask 1044480
    %v36 = vsel %vm34, %v24, 0
    %38 = vmatprep.subr.mxu0 0.0
    %39 = vmatpush1.msra.mxu0 %v36
    %40 = vmatprep.subr.mxu0 0.0
    %41 = vmatpush1.msra.mxu0 0.0
    %42 = vmatprep.subr.mxu0 0.0
    %43 = vmatpush1.msra.mxu0 0.0
    %44 = vmatprep.subr.mxu0 0.0
    %45 = vmatpush1.msra.mxu0 0.0
    %46 = vmatprep.subr.mxu0 0.0
    %47 = vmatpush1.msra.mxu0 0.0
    %48 = vmatprep.subr.mxu0 0.0
    %49 = vmatpush1.msra.mxu0 0.0
    %50 = vmatprep.subr.mxu0 0.0
    %51 = vmatpush1.msra.mxu0 0.0
    %52 = vmatprep.subr.mxu0 0.0
    %53 = vmatpush1.msra.mxu0 0.0
    %54 = vmatprep.subr.mxu0 0.0
    %55 = vmatpush1.msra.mxu0 0.0
    %56 = vmatprep.subr.mxu0 0.0
    %57 = vmatpush1.msra.mxu0 0.0
    %58 = vmatprep.subr.mxu0 0.0
    %59 = vmatpush1.msra.mxu0 0.0
    %60 = vmatprep.subr.mxu0 0.0
    %61 = vmatpush1.msra.mxu0 0.0
    %62 = vmatprep.subr.mxu0 0.0
    %63 = vmatpush1.msra.mxu0 0.0
    %64 = vmatprep.subr.mxu0 0.0
    %65 = vmatpush1.msra.mxu0 0.0
    %66 = vmatprep.subr.mxu0 0.0
    %67 = vmatpush1.msra.mxu0 0.0
    %68 = vmatprep.subr.mxu0 0.0
    %69 = vmatpush1.msra.mxu0 0.0
    %70 = vmatprep.subr.mxu0 0.0
    %71 = vmatpush1.msra.mxu0 0.0
    %72 = vmatprep.subr.mxu0 0.0
    %73 = vmatpush1.msra.mxu0 0.0
    %74 = vmatprep.subr.mxu0 0.0
    %75 = vmatpush1.msra.mxu0 0.0
    %76 = vmatprep.subr.mxu0 0.0
    %77 = vmatpush1.msra.mxu0 0.0
    %78 = vmatprep.subr.mxu0 0.0
    %79 = vmatpush1.msra.mxu0 0.0
    %80 = vmatprep.subr.mxu0 0.0
    %81 = vmatpush1.msra.mxu0 0.0
    %82 = vmatprep.subr.mxu0 0.0
    %83 = vmatpush1.msra.mxu0 0.0
    %84 = vmatprep.subr.mxu0 0.0
    %85 = vmatpush1.msra.mxu0 0.0
    %86 = vmatprep.subr.mxu0 0.0
    %87 = vmatpush1.msra.mxu0 0.0
    %88 = vmatprep.subr.mxu0 0.0
    %89 = vmatpush1.msra.mxu0 0.0
    %90 = vmatprep.subr.mxu0 0.0
    %91 = vmatpush1.msra.mxu0 0.0
    %92 = vmatprep.subr.mxu0 0.0
    %93 = vmatpush1.msra.mxu0 0.0
    %94 = vmatprep.subr.mxu0 0.0
    %95 = vmatpush1.msra.mxu0 0.0
    %96 = vmatprep.subr.mxu0 0.0
    %97 = vmatpush1.msra.mxu0 0.0
    %98 = vmatprep.subr.mxu0 0.0
    %99 = vmatpush1.msra.mxu0 0.0
    %100 = vmatprep.subr.mxu0 0.0
    %101 = vmatpush1.msra.mxu0 0.0
    %102 = vmatprep.mubr.f32.mxu0 0.0
    %103 = vmatmul.mubr.f32.gmra.mrb[0].mxu0 %v32
    %v104 = vpop.f32.mrb[0].mxu0
    %v105 = vadd.f32 %v29, %v104
    %v106 = vpop.f32.mrb[0].mxu0
    %107 = vdwg.mxu0
    %v108 = vld [vmem:[%s0] sm:$0xff]
    %v109 = vld [vmem:[%s2 + $0x10] sm:$0xff]
    %v110 = vld [vmem:[%s2 + $0x18] sm:$0xff]
    %v111 = vld [vmem:[%s2 + $0x20] sm:$0xff]
    %v112 = vld [vmem:[%s2 + $0x28] sm:$0xff]
    %v113 = vld [vmem:[%s2 + $0x30] sm:$0xff]
    %v114 = vld [vmem:[%s2 + $0x38] sm:$0xff]
    %v115 = vld [vmem:[%s2 + $0x40] sm:$0x3]
    %v116 = vld [vmem:[%s2 + $0x48] sm:$0x1f]
    %v118 = vsel %vm30, %v105, 0
    %v121 = vsel %vm34, %v116, 0
    %123 = vmatprep.subr.mxu0 0.0
    %124 = vmatpush1.msra.mxu0 %v121
    %125 = vmatprep.subr.mxu0 0.0
    %126 = vmatpush1.msra.mxu0 0.0
    %127 = vmatprep.subr.mxu0 0.0
    %128 = vmatpush1.msra.mxu0 0.0
    %129 = vmatprep.subr.mxu0 0.0
    %130 = vmatpush1.msra.mxu0 0.0
    %131 = vmatprep.subr.mxu0 0.0
    %132 = vmatpush1.msra.mxu0 0.0
    %133 = vmatprep.subr.mxu0 0.0
    %134 = vmatpush1.msra.mxu0 0.0
    %135 = vmatprep.subr.mxu0 0.0
    %136 = vmatpush1.msra.mxu0 0.0
    %137 = vmatprep.subr.mxu0 0.0
    %138 = vmatpush1.msra.mxu0 0.0
    %139 = vmatprep.subr.mxu0 0.0
    %140 = vmatpush1.msra.mxu0 0.0
    %141 = vmatprep.subr.mxu0 0.0
    %142 = vmatpush1.msra.mxu0 0.0
    %143 = vmatprep.subr.mxu0 0.0
    %144 = vmatpush1.msra.mxu0 0.0
    %145 = vmatprep.subr.mxu0 0.0
    %146 = vmatpush1.msra.mxu0 0.0
    %147 = vmatprep.subr.mxu0 0.0
    %148 = vmatpush1.msra.mxu0 0.0
    %149 = vmatprep.subr.mxu0 0.0
    %150 = vmatpush1.msra.mxu0 0.0
    %151 = vmatprep.subr.mxu0 0.0
    %152 = vmatpush1.msra.mxu0 0.0
    %153 = vmatprep.subr.mxu0 0.0
    %154 = vmatpush1.msra.mxu0 0.0
    %155 = vmatprep.subr.mxu0 0.0
    %156 = vmatpush1.msra.mxu0 0.0
    %157 = vmatprep.subr.mxu0 0.0
    %158 = vmatpush1.msra.mxu0 0.0
    %159 = vmatprep.subr.mxu0 0.0
    %160 = vmatpush1.msra.mxu0 0.0
    %161 = vmatprep.subr.mxu0 0.0
    %162 = vmatpush1.msra.mxu0 0.0
    %163 = vmatprep.subr.mxu0 0.0
    %164 = vmatpush1.msra.mxu0 0.0
    %165 = vmatprep.subr.mxu0 0.0
    %166 = vmatpush1.msra.mxu0 0.0
    %167 = vmatprep.subr.mxu0 0.0
    %168 = vmatpush1.msra.mxu0 0.0
    %169 = vmatprep.subr.mxu0 0.0
    %170 = vmatpush1.msra.mxu0 0.0
    %171 = vmatprep.subr.mxu0 0.0
    %172 = vmatpush1.msra.mxu0 0.0
    %173 = vmatprep.subr.mxu0 0.0
    %174 = vmatpush1.msra.mxu0 0.0
    %175 = vmatprep.subr.mxu0 0.0
    %176 = vmatpush1.msra.mxu0 0.0
    %177 = vmatprep.subr.mxu0 0.0
    %178 = vmatpush1.msra.mxu0 0.0
    %179 = vmatprep.subr.mxu0 0.0
    %180 = vmatpush1.msra.mxu0 0.0
    %181 = vmatprep.subr.mxu0 0.0
    %182 = vmatpush1.msra.mxu0 0.0
    %183 = vmatprep.subr.mxu0 0.0
    %184 = vmatpush1.msra.mxu0 0.0
    %185 = vmatprep.subr.mxu0 0.0
    %186 = vmatpush1.msra.mxu0 0.0
    %187 = vmatprep.mubr.f32.mxu0 0.0
    %188 = vmatmul.mubr.f32.gmra.mrb[0].mxu0 %v118
    %v189 = vpop.f32.mrb[0].mxu0
    %v190 = vadd.f32 0.0, %v189
    %v191 = vpop.f32.mrb[0].mxu0
    %192 = vdwg.mxu0
    %vm193 = vcmask 408576
    %v195 = vsel %vm193, %v108, 0
    %vm197 = vcmask 1041408
    %v199 = vsel %vm197, %v115, 0
    %201 = vmatprep.subr.mxu0 0.0
    %202 = vmatpush1.msra.mxu0 %v109
    %203 = vmatprep.subr.mxu0 0.0
    %204 = vmatpush1.msra.mxu0 %v110
    %205 = vmatprep.subr.mxu0 0.0
    %206 = vmatpush1.msra.mxu0 %v111
    %207 = vmatprep.subr.mxu0 0.0
    %208 = vmatpush1.msra.mxu0 %v112
    %209 = vmatprep.subr.mxu0 0.0
    %210 = vmatpush1.msra.mxu0 %v113
    %211 = vmatprep.subr.mxu0 0.0
    %212 = vmatpush1.msra.mxu0 %v114
    %213 = vmatprep.subr.mxu0 0.0
    %214 = vmatpush1.msra.mxu0 %v199
    %215 = vmatprep.subr.mxu0 0.0
    %216 = vmatpush1.msra.mxu0 0.0
    %217 = vmatprep.subr.mxu0 0.0
    %218 = vmatpush1.msra.mxu0 0.0
    %219 = vmatprep.subr.mxu0 0.0
    %220 = vmatpush1.msra.mxu0 0.0
    %221 = vmatprep.subr.mxu0 0.0
    %222 = vmatpush1.msra.mxu0 0.0
    %223 = vmatprep.subr.mxu0 0.0
    %224 = vmatpush1.msra.mxu0 0.0
    %225 = vmatprep.subr.mxu0 0.0
    %226 = vmatpush1.msra.mxu0 0.0
    %227 = vmatprep.subr.mxu0 0.0
    %228 = vmatpush1.msra.mxu0 0.0
    %229 = vmatprep.subr.mxu0 0.0
    %230 = vmatpush1.msra.mxu0 0.0
    %231 = vmatprep.subr.mxu0 0.0
    %232 = vmatpush1.msra.mxu0 0.0
    %233 = vmatprep.subr.mxu0 0.0
    %234 = vmatpush1.msra.mxu0 0.0
    %235 = vmatprep.subr.mxu0 0.0
    %236 = vmatpush1.msra.mxu0 0.0
    %237 = vmatprep.subr.mxu0 0.0
    %238 = vmatpush1.msra.mxu0 0.0
    %239 = vmatprep.subr.mxu0 0.0
    %240 = vmatpush1.msra.mxu0 0.0
    %241 = vmatprep.subr.mxu0 0.0
    %242 = vmatpush1.msra.mxu0 0.0
    %243 = vmatprep.subr.mxu0 0.0
    %244 = vmatpush1.msra.mxu0 0.0
    %245 = vmatprep.subr.mxu0 0.0
    %246 = vmatpush1.msra.mxu0 0.0
    %247 = vmatprep.subr.mxu0 0.0
    %248 = vmatpush1.msra.mxu0 0.0
    %249 = vmatprep.subr.mxu0 0.0
    %250 = vmatpush1.msra.mxu0 0.0
    %251 = vmatprep.subr.mxu0 0.0
    %252 = vmatpush1.msra.mxu0 0.0
    %253 = vmatprep.subr.mxu0 0.0
    %254 = vmatpush1.msra.mxu0 0.0
    %255 = vmatprep.subr.mxu0 0.0
    %256 = vmatpush1.msra.mxu0 0.0
    %257 = vmatprep.subr.mxu0 0.0
    %258 = vmatpush1.msra.mxu0 0.0
    %259 = vmatprep.subr.mxu0 0.0
    %260 = vmatpush1.msra.mxu0 0.0
    %261 = vmatprep.subr.mxu0 0.0
    %262 = vmatpush1.msra.mxu0 0.0
    %263 = vmatprep.subr.mxu0 0.0
    %264 = vmatpush1.msra.mxu0 0.0
    %265 = vmatprep.mubr.f32.mxu0 0.0
    %266 = vmatmul.mubr.f32.gmra.mrb[0].mxu0 %v195
    %v267 = vpop.f32.mrb[0].mxu0
    %v268 = vadd.f32 %v190, %v267
    %v269 = vpop.f32.mrb[0].mxu0
    %270 = vdwg.mxu0
    %v271 = vld [vmem:[%s2 + $0x50] sm:$0x1]
    %v272 = vlaneseq
    %v273 = vshrl.u32 %v272, 7
    %v274 = vsub.s32 0, %v273
    %v275 = vrot.slane %v271, %v274
    %v276 = vadd.f32 %v268, %v275
    %v277 = vmax.f32 %v276, 0.0
    %v278 = vld [vmem:[%s2 + $0x58] sm:$0xff]
    %v279 = vld [vmem:[%s2 + $0x60] sm:$0xff]
    %v280 = vld [vmem:[%s2 + $0x68] sm:$0xff]
    %v281 = vld [vmem:[%s2 + $0x70] sm:$0xff]
    %v282 = vld [vmem:[%s2 + $0x78] sm:$0xff]
    %v283 = vld [vmem:[%s2 + $0x80] sm:$0xff]
    %v284 = vld [vmem:[%s2 + $0x88] sm:$0xff]
    %v285 = vld [vmem:[%s2 + $0x90] sm:$0xff]
    %v286 = vld [vmem:[%s2 + $0x98] sm:$0xff]
    %v287 = vld [vmem:[%s2 + $0xa0] sm:$0xff]
    %v288 = vld [vmem:[%s2 + $0xa8] sm:$0xff]
    %v289 = vld [vmem:[%s2 + $0xb0] sm:$0xff]
    %v290 = vld [vmem:[%s2 + $0xb8] sm:$0xf]
    %vm291 = vcmask 818176
    %v293 = vsel %vm291, %v277, 0
    %vm295 = vcmask 1043456
    %v297 = vsel %vm295, %v290, 0
    %299 = vmatprep.subr.mxu0 0.0
    %300 = vmatpush1.msra.mxu0 %v278
    %301 = vmatprep.subr.mxu0 0.0
    %302 = vmatpush1.msra.mxu0 %v279
    %303 = vmatprep.subr.mxu0 0.0
    %304 = vmatpush1.msra.mxu0 %v280
    %305 = vmatprep.subr.mxu0 0.0
    %306 = vmatpush1.msra.mxu0 %v281
    %307 = vmatprep.subr.mxu0 0.0
    %308 = vmatpush1.msra.mxu0 %v282
    %309 = vmatprep.subr.mxu0 0.0
    %310 = vmatpush1.msra.mxu0 %v283
    %311 = vmatprep.subr.mxu0 0.0
    %312 = vmatpush1.msra.mxu0 %v284
    %313 = vmatprep.subr.mxu0 0.0
    %314 = vmatpush1.msra.mxu0 %v285
    %315 = vmatprep.subr.mxu0 0.0
    %316 = vmatpush1.msra.mxu0 %v286
    %317 = vmatprep.subr.mxu0 0.0
    %318 = vmatpush1.msra.mxu0 %v287
    %319 = vmatprep.subr.mxu0 0.0
    %320 = vmatpush1.msra.mxu0 %v288
    %321 = vmatprep.subr.mxu0 0.0
    %322 = vmatpush1.msra.mxu0 %v289
    %323 = vmatprep.subr.mxu0 0.0
    %324 = vmatpush1.msra.mxu0 %v297
    %325 = vmatprep.subr.mxu0 0.0
    %326 = vmatpush1.msra.mxu0 0.0
    %327 = vmatprep.subr.mxu0 0.0
    %328 = vmatpush1.msra.mxu0 0.0
    %329 = vmatprep.subr.mxu0 0.0
    %330 = vmatpush1.msra.mxu0 0.0
    %331 = vmatprep.subr.mxu0 0.0
    %332 = vmatpush1.msra.mxu0 0.0
    %333 = vmatprep.subr.mxu0 0.0
    %334 = vmatpush1.msra.mxu0 0.0
    %335 = vmatprep.subr.mxu0 0.0
    %336 = vmatpush1.msra.mxu0 0.0
    %337 = vmatprep.subr.mxu0 0.0
    %338 = vmatpush1.msra.mxu0 0.0
    %339 = vmatprep.subr.mxu0 0.0
    %340 = vmatpush1.msra.mxu0 0.0
    %341 = vmatprep.subr.mxu0 0.0
    %342 = vmatpush1.msra.mxu0 0.0
    %343 = vmatprep.subr.mxu0 0.0
    %344 = vmatpush1.msra.mxu0 0.0
    %345 = vmatprep.subr.mxu0 0.0
    %346 = vmatpush1.msra.mxu0 0.0
    %347 = vmatprep.subr.mxu0 0.0
    %348 = vmatpush1.msra.mxu0 0.0
    %349 = vmatprep.subr.mxu0 0.0
    %350 = vmatpush1.msra.mxu0 0.0
    %351 = vmatprep.subr.mxu0 0.0
    %352 = vmatpush1.msra.mxu0 0.0
    %353 = vmatprep.subr.mxu0 0.0
    %354 = vmatpush1.msra.mxu0 0.0
    %355 = vmatprep.subr.mxu0 0.0
    %356 = vmatpush1.msra.mxu0 0.0
    %357 = vmatprep.subr.mxu0 0.0
    %358 = vmatpush1.msra.mxu0 0.0
    %359 = vmatprep.subr.mxu0 0.0
    %360 = vmatpush1.msra.mxu0 0.0
    %361 = vmatprep.subr.mxu0 0.0
    %362 = vmatpush1.msra.mxu0 0.0
    %363 = vmatprep.mubr.f32.mxu0 0.0
    %364 = vmatmul.mubr.f32.gmra.mrb[0].mxu0 %v293
    %v365 = vpop.f32.mrb[0].mxu0
    %v366 = vadd.f32 0.0, %v365
    %v367 = vpop.f32.mrb[0].mxu0
    %368 = vdwg.mxu0
    %v369 = vsel %vm291, %v366, 0.0
    %v370 = vrot.slane %v369, 4
    %v371 = vadd.f32 %v369, %v370
    %v372 = vrot.slane %v371, 2
    %v373 = vadd.f32 %v371, %v372
    %v374 = vrot.slane %v373, 1
    %v375 = vadd.f32 %v373, %v374
    %v376 = vmul.f32 %v366, %v366
    %v377 = vsel %vm291, %v376, 0.0
    %v378 = vrot.slane %v377, 4
    %v379 = vadd.f32 %v377, %v378
    %v380 = vrot.slane %v379, 2
    %v381 = vadd.f32 %v379, %v380
    %v382 = vrot.slane %v381, 1
    %v383 = vadd.f32 %v381, %v382
    %v384 = vmul.f32 %v375, 0.125
    %v385 = vmul.f32 %v383, 0.125
    %v386 = vmul.f32 %v384, %v384
    %v387 = vsub.f32 %v385, %v386
    %v388 = vmax.f32 %v387, 0.0
    %v389 = vld [vmem:[%s2 + $0x190] sm:$0x1]
    %v390 = vld [vmem:[%s2 + $0x198] sm:$0x1]
    %v391 = vsub.f32 %v366, %v384
    %v392 = vadd.f32 %v388, 1e-05
    %v393 = vrsqrt.pop %v392
    %v394 = vmul.f32 %v391, %v393
    %v395 = vlaneseq
    %v396 = vshrl.u32 %v395, 7
    %v397 = vsub.s32 0, %v396
    %v398 = vrot.slane %v389, %v397
    %v399 = vmul.f32 %v394, %v398
    %v400 = vlaneseq
    %v401 = vshrl.u32 %v400, 7
    %v402 = vsub.s32 0, %v401
    %v403 = vrot.slane %v390, %v402
    %v404 = vadd.f32 %v399, %v403
    %v405 = vmax.f32 %v404, 0.0
    %v406 = vld [vmem:[%s2 + $0xc0] sm:$0xff]
    %v407 = vld [vmem:[%s2 + $0xc8] sm:$0xff]
    %v408 = vld [vmem:[%s2 + $0xd0] sm:$0xff]
    %v409 = vld [vmem:[%s2 + $0xd8] sm:$0xff]
    %v410 = vld [vmem:[%s2 + $0xe0] sm:$0xff]
    %v411 = vld [vmem:[%s2 + $0xe8] sm:$0xff]
    %v412 = vld [vmem:[%s2 + $0xf0] sm:$0xff]
    %v413 = vld [vmem:[%s2 + $0xf8] sm:$0xff]
    %v414 = vld [vmem:[%s2 + $0x100] sm:$0xff]
    %v415 = vld [vmem:[%s2 + $0x108] sm:$0xff]
    %v416 = vld [vmem:[%s2 + $0x110] sm:$0xff]
    %v417 = vld [vmem:[%s2 + $0x118] sm:$0xff]
    %v418 = vld [vmem:[%s2 + $0x120] sm:$0xf]
    %v420 = vsel %vm291, %v405, 0
    %v423 = vsel %vm295, %v418, 0
    %425 = vmatprep.subr.mxu0 0.0
    %426 = vmatpush1.msra.mxu0 %v406
    %427 = vmatprep.subr.mxu0 0.0
    %428 = vmatpush1.msra.mxu0 %v407
    %429 = vmatprep.subr.mxu0 0.0
    %430 = vmatpush1.msra.mxu0 %v408
    %431 = vmatprep.subr.mxu0 0.0
    %432 = vmatpush1.msra.mxu0 %v409
    %433 = vmatprep.subr.mxu0 0.0
    %434 = vmatpush1.msra.mxu0 %v410
    %435 = vmatprep.subr.mxu0 0.0
    %436 = vmatpush1.msra.mxu0 %v411
    %437 = vmatprep.subr.mxu0 0.0
    %438 = vmatpush1.msra.mxu0 %v412
    %439 = vmatprep.subr.mxu0 0.0
    %440 = vmatpush1.msra.mxu0 %v413
    %441 = vmatprep.subr.mxu0 0.0
    %442 = vmatpush1.msra.mxu0 %v414
    %443 = vmatprep.subr.mxu0 0.0
    %444 = vmatpush1.msra.mxu0 %v415
    %445 = vmatprep.subr.mxu0 0.0
    %446 = vmatpush1.msra.mxu0 %v416
    %447 = vmatprep.subr.mxu0 0.0
    %448 = vmatpush1.msra.mxu0 %v417
    %449 = vmatprep.subr.mxu0 0.0
    %450 = vmatpush1.msra.mxu0 %v423
    %451 = vmatprep.subr.mxu0 0.0
    %452 = vmatpush1.msra.mxu0 0.0
    %453 = vmatprep.subr.mxu0 0.0
    %454 = vmatpush1.msra.mxu0 0.0
    %455 = vmatprep.subr.mxu0 0.0
    %456 = vmatpush1.msra.mxu0 0.0
    %457 = vmatprep.subr.mxu0 0.0
    %458 = vmatpush1.msra.mxu0 0.0
    %459 = vmatprep.subr.mxu0 0.0
    %460 = vmatpush1.msra.mxu0 0.0
    %461 = vmatprep.subr.mxu0 0.0
    %462 = vmatpush1.msra.mxu0 0.0
    %463 = vmatprep.subr.mxu0 0.0
    %464 = vmatpush1.msra.mxu0 0.0
    %465 = vmatprep.subr.mxu0 0.0
    %466 = vmatpush1.msra.mxu0 0.0
    %467 = vmatprep.subr.mxu0 0.0
    %468 = vmatpush1.msra.mxu0 0.0
    %469 = vmatprep.subr.mxu0 0.0
    %470 = vmatpush1.msra.mxu0 0.0
    %471 = vmatprep.subr.mxu0 0.0
    %472 = vmatpush1.msra.mxu0 0.0
    %473 = vmatprep.subr.mxu0 0.0
    %474 = vmatpush1.msra.mxu0 0.0
    %475 = vmatprep.subr.mxu0 0.0
    %476 = vmatpush1.msra.mxu0 0.0
    %477 = vmatprep.subr.mxu0 0.0
    %478 = vmatpush1.msra.mxu0 0.0
    %479 = vmatprep.subr.mxu0 0.0
    %480 = vmatpush1.msra.mxu0 0.0
    %481 = vmatprep.subr.mxu0 0.0
    %482 = vmatpush1.msra.mxu0 0.0
    %483 = vmatprep.subr.mxu0 0.0
    %484 = vmatpush1.msra.mxu0 0.0
    %485 = vmatprep.subr.mxu0 0.0
    %486 = vmatpush1.msra.mxu0 0.0
    %487 = vmatprep.subr.mxu0 0.0
    %488 = vmatpush1.msra.mxu0 0.0
    %489 = vmatprep.mubr.f32.mxu0 0.0
    %490 = vmatmul.mubr.f32.gmra.mrb[0].mxu0 %v420
    %v491 = vpop.f32.mrb[0].mxu0
    %v492 = vadd.f32 0.0, %v491
    %v493 = vpop.f32.mrb[0].mxu0
    %494 = vdwg.mxu0
    %v495 = vsel %vm291, %v492, 0.0
    %v496 = vrot.slane %v495, 4
    %v497 = vadd.f32 %v495, %v496
    %v498 = vrot.slane %v497, 2
    %v499 = vadd.f32 %v497, %v498
    %v500 = vrot.slane %v499, 1
    %v501 = vadd.f32 %v499, %v500
    %v502 = vmul.f32 %v492, %v492
    %v503 = vsel %vm291, %v502, 0.0
    %v504 = vrot.slane %v503, 4
    %v505 = vadd.f32 %v503, %v504
    %v506 = vrot.slane %v505, 2
    %v507 = vadd.f32 %v505, %v506
    %v508 = vrot.slane %v507, 1
    %v509 = vadd.f32 %v507, %v508
    %v510 = vmul.f32 %v501, 0.125
    %v511 = vmul.f32 %v509, 0.125
    %v512 = vmul.f32 %v510, %v510
    %v513 = vsub.f32 %v511, %v512
    %v514 = vmax.f32 %v513, 0.0
    %v515 = vld [vmem:[%s2 + $0x191] sm:$0x1]
    %v516 = vld [vmem:[%s2 + $0x199] sm:$0x1]
    %v517 = vsub.f32 %v492, %v510
    %v518 = vadd.f32 %v514, 1e-05
    %v519 = vrsqrt.pop %v518
    %v520 = vmul.f32 %v517, %v519
    %v521 = vlaneseq
    %v522 = vshrl.u32 %v521, 7
    %v523 = vsub.s32 0, %v522
    %v524 = vrot.slane %v515, %v523
    %v525 = vmul.f32 %v520, %v524
    %v526 = vlaneseq
    %v527 = vshrl.u32 %v526, 7
    %v528 = vsub.s32 0, %v527
    %v529 = vrot.slane %v516, %v528
    %v530 = vadd.f32 %v525, %v529
    %v531 = vmax.f32 %v530, 0.0
    %v532 = vld [vmem:[%s2 + $0x128] sm:$0xff]
    %v533 = vld [vmem:[%s2 + $0x130] sm:$0xff]
    %v534 = vld [vmem:[%s2 + $0x138] sm:$0xff]
    %v535 = vld [vmem:[%s2 + $0x140] sm:$0xff]
    %v536 = vld [vmem:[%s2 + $0x148] sm:$0xff]
    %v537 = vld [vmem:[%s2 + $0x150] sm:$0xff]
    %v538 = vld [vmem:[%s2 + $0x158] sm:$0xff]
    %v539 = vld [vmem:[%s2 + $0x160] sm:$0xff]
    %v540 = vld [vmem:[%s2 + $0x168] sm:$0xff]
    %v541 = vld [vmem:[%s2 + $0x170] sm:$0xff]
    %v542 = vld [vmem:[%s2 + $0x178] sm:$0xff]
    %v543 = vld [vmem:[%s2 + $0x180] sm:$0xff]
    %v544 = vld [vmem:[%s2 + $0x188] sm:$0xf]
    %v546 = vsel %vm291, %v531, 0
    %v549 = vsel %vm295, %v544, 0
    %551 = vmatprep.subr.mxu0 0.0
    %552 = vmatpush1.msra.mxu0 %v532
    %553 = vmatprep.subr.mxu0 0.0
    %554 = vmatpush1.msra.mxu0 %v533
    %555 = vmatprep.subr.mxu0 0.0
    %556 = vmatpush1.msra.mxu0 %v534
    %557 = vmatprep.subr.mxu0 0.0
    %558 = vmatpush1.msra.mxu0 %v535
    %559 = vmatprep.subr.mxu0 0.0
    %560 = vmatpush1.msra.mxu0 %v536
    %561 = vmatprep.subr.mxu0 0.0
    %562 = vmatpush1.msra.mxu0 %v537
    %563 = vmatprep.subr.mxu0 0.0
    %564 = vmatpush1.msra.mxu0 %v538
    %565 = vmatprep.subr.mxu0 0.0
    %566 = vmatpush1.msra.mxu0 %v539
    %567 = vmatprep.subr.mxu0 0.0
    %568 = vmatpush1.msra.mxu0 %v540
    %569 = vmatprep.subr.mxu0 0.0
    %570 = vmatpush1.msra.mxu0 %v541
    %571 = vmatprep.subr.mxu0 0.0
    %572 = vmatpush1.msra.mxu0 %v542
    %573 = vmatprep.subr.mxu0 0.0
    %574 = vmatpush1.msra.mxu0 %v543
    %575 = vmatprep.subr.mxu0 0.0
    %576 = vmatpush1.msra.mxu0 %v549
    %577 = vmatprep.subr.mxu0 0.0
    %578 = vmatpush1.msra.mxu0 0.0
    %579 = vmatprep.subr.mxu0 0.0
    %580 = vmatpush1.msra.mxu0 0.0
    %581 = vmatprep.subr.mxu0 0.0
    %582 = vmatpush1.msra.mxu0 0.0
    %583 = vmatprep.subr.mxu0 0.0
    %584 = vmatpush1.msra.mxu0 0.0
    %585 = vmatprep.subr.mxu0 0.0
    %586 = vmatpush1.msra.mxu0 0.0
    %587 = vmatprep.subr.mxu0 0.0
    %588 = vmatpush1.msra.mxu0 0.0
    %589 = vmatprep.subr.mxu0 0.0
    %590 = vmatpush1.msra.mxu0 0.0
    %591 = vmatprep.subr.mxu0 0.0
    %592 = vmatpush1.msra.mxu0 0.0
    %593 = vmatprep.subr.mxu0 0.0
    %594 = vmatpush1.msra.mxu0 0.0
    %595 = vmatprep.subr.mxu0 0.0
    %596 = vmatpush1.msra.mxu0 0.0
    %597 = vmatprep.subr.mxu0 0.0
    %598 = vmatpush1.msra.mxu0 0.0
    %599 = vmatprep.subr.mxu0 0.0
    %600 = vmatpush1.msra.mxu0 0.0
    %601 = vmatprep.subr.mxu0 0.0
    %602 = vmatpush1.msra.mxu0 0.0
    %603 = vmatprep.subr.mxu0 0.0
    %604 = vmatpush1.msra.mxu0 0.0
    %605 = vmatprep.subr.mxu0 0.0
    %606 = vmatpush1.msra.mxu0 0.0
    %607 = vmatprep.subr.mxu0 0.0
    %608 = vmatpush1.msra.mxu0 0.0
    %609 = vmatprep.subr.mxu0 0.0
    %610 = vmatpush1.msra.mxu0 0.0
    %611 = vmatprep.subr.mxu0 0.0
    %612 = vmatpush1.msra.mxu0 0.0
    %613 = vmatprep.subr.mxu0 0.0
    %614 = vmatpush1.msra.mxu0 0.0
    %615 = vmatprep.mubr.f32.mxu0 0.0
    %616 = vmatmul.mubr.f32.gmra.mrb[0].mxu0 %v546
    %v617 = vpop.f32.mrb[0].mxu0
    %v618 = vadd.f32 0.0, %v617
    %v619 = vpop.f32.mrb[0].mxu0
    %620 = vdwg.mxu0
    %v621 = vsel %vm291, %v618, 0.0
    %v622 = vrot.slane %v621, 4
    %v623 = vadd.f32 %v621, %v622
    %v624 = vrot.slane %v623, 2
    %v625 = vadd.f32 %v623, %v624
    %v626 = vrot.slane %v625, 1
    %v627 = vadd.f32 %v625, %v626
    %v628 = vmul.f32 %v618, %v618
    %v629 = vsel %vm291, %v628, 0.0
    %v630 = vrot.slane %v629, 4
    %v631 = vadd.f32 %v629, %v630
    %v632 = vrot.slane %v631, 2
    %v633 = vadd.f32 %v631, %v632
    %v634 = vrot.slane %v633, 1
    %v635 = vadd.f32 %v633, %v634
    %v636 = vmul.f32 %v627, 0.125
    %v637 = vmul.f32 %v635, 0.125
    %v638 = vmul.f32 %v636, %v636
    %v639 = vsub.f32 %v637, %v638
    %v640 = vmax.f32 %v639, 0.0
    %v641 = vld [vmem:[%s2 + $0x192] sm:$0x1]
    %v642 = vld [vmem:[%s2 + $0x19a] sm:$0x1]
    %v643 = vsub.f32 %v618, %v636
    %v644 = vadd.f32 %v640, 1e-05
    %v645 = vrsqrt.pop %v644
    %v646 = vmul.f32 %v643, %v645
    %v647 = vlaneseq
    %v648 = vshrl.u32 %v647, 7
    %v649 = vsub.s32 0, %v648
    %v650 = vrot.slane %v641, %v649
    %v651 = vmul.f32 %v646, %v650
    %v652 = vlaneseq
    %v653 = vshrl.u32 %v652, 7
    %v654 = vsub.s32 0, %v653
    %v655 = vrot.slane %v642, %v654
    %v656 = vadd.f32 %v651, %v655
    %v657 = vmax.f32 %v656, 0.0
    %v658 = vld [vmem:[%s2 + $0x1a0] sm:$0xff]
    %v659 = vld [vmem:[%s2 + $0x1a8] sm:$0xff]
    %v660 = vld [vmem:[%s2 + $0x1b0] sm:$0xff]
    %v661 = vld [vmem:[%s2 + $0x1b8] sm:$0xff]
    %v662 = vld [vmem:[%s2 + $0x1c0] sm:$0xff]
    %v663 = vld [vmem:[%s2 + $0x1c8] sm:$0xff]
    %v664 = vld [vmem:[%s2 + $0x1d0] sm:$0xff]
    %v665 = vld [vmem:[%s2 + $0x1d8] sm:$0xff]
    %v666 = vld [vmem:[%s2 + $0x1e0] sm:$0xff]
    %v667 = vld [vmem:[%s2 + $0x1e8] sm:$0xff]
    %v668 = vld [vmem:[%s2 + $0x1f0] sm:$0xff]
    %v669 = vld [vmem:[%s2 + $0x1f8] sm:$0xff]
    %v670 = vld [vmem:[%s2 + $0x200] sm:$0xf]
    %v671 = vld [vmem:[%s2 + $0x208] sm:$0x1]
    %v672 = vlaneseq
    %v673 = vshrl.u32 %v672, 7
    %v674 = vsub.s32 0, %v673
    %v675 = vrot.slane %v671, %v674
    %v677 = vsel %vm291, %v657, 0
    %v680 = vsel %vm295, %v670, 0
    %682 = vmatprep.subr.mxu0 0.0
    %683 = vmatpush1.msra.mxu0 %v658
    %684 = vmatprep.subr.mxu0 0.0
    %685 = vmatpush1.msra.mxu0 %v659
    %686 = vmatprep.subr.mxu0 0.0
    %687 = vmatpush1.msra.mxu0 %v660
    %688 = vmatprep.subr.mxu0 0.0
    %689 = vmatpush1.msra.mxu0 %v661
    %690 = vmatprep.subr.mxu0 0.0
    %691 = vmatpush1.msra.mxu0 %v662
    %692 = vmatprep.subr.mxu0 0.0
    %693 = vmatpush1.msra.mxu0 %v663
    %694 = vmatprep.subr.mxu0 0.0
    %695 = vmatpush1.msra.mxu0 %v664
    %696 = vmatprep.subr.mxu0 0.0
    %697 = vmatpush1.msra.mxu0 %v665
    %698 = vmatprep.subr.mxu0 0.0
    %699 = vmatpush1.msra.mxu0 %v666
    %700 = vmatprep.subr.mxu0 0.0
    %701 = vmatpush1.msra.mxu0 %v667
    %702 = vmatprep.subr.mxu0 0.0
    %703 = vmatpush1.msra.mxu0 %v668
    %704 = vmatprep.subr.mxu0 0.0
    %705 = vmatpush1.msra.mxu0 %v669
    %706 = vmatprep.subr.mxu0 0.0
    %707 = vmatpush1.msra.mxu0 %v680
    %708 = vmatprep.subr.mxu0 0.0
    %709 = vmatpush1.msra.mxu0 0.0
    %710 = vmatprep.subr.mxu0 0.0
    %711 = vmatpush1.msra.mxu0 0.0
    %712 = vmatprep.subr.mxu0 0.0
    %713 = vmatpush1.msra.mxu0 0.0
    %714 = vmatprep.subr.mxu0 0.0
    %715 = vmatpush1.msra.mxu0 0.0
    %716 = vmatprep.subr.mxu0 0.0
    %717 = vmatpush1.msra.mxu0 0.0
    %718 = vmatprep.subr.mxu0 0.0
    %719 = vmatpush1.msra.mxu0 0.0
    %720 = vmatprep.subr.mxu0 0.0
    %721 = vmatpush1.msra.mxu0 0.0
    %722 = vmatprep.subr.mxu0 0.0
    %723 = vmatpush1.msra.mxu0 0.0
    %724 = vmatprep.subr.mxu0 0.0
    %725 = vmatpush1.msra.mxu0 0.0
    %726 = vmatprep.subr.mxu0 0.0
    %727 = vmatpush1.msra.mxu0 0.0
    %728 = vmatprep.subr.mxu0 0.0
    %729 = vmatpush1.msra.mxu0 0.0
    %730 = vmatprep.subr.mxu0 0.0
    %731 = vmatpush1.msra.mxu0 0.0
    %732 = vmatprep.subr.mxu0 0.0
    %733 = vmatpush1.msra.mxu0 0.0
    %734 = vmatprep.subr.mxu0 0.0
    %735 = vmatpush1.msra.mxu0 0.0
    %736 = vmatprep.subr.mxu0 0.0
    %737 = vmatpush1.msra.mxu0 0.0
    %738 = vmatprep.subr.mxu0 0.0
    %739 = vmatpush1.msra.mxu0 0.0
    %740 = vmatprep.subr.mxu0 0.0
    %741 = vmatpush1.msra.mxu0 0.0
    %742 = vmatprep.subr.mxu0 0.0
    %743 = vmatpush1.msra.mxu0 0.0
    %744 = vmatprep.subr.mxu0 0.0
    %745 = vmatpush1.msra.mxu0 0.0
    %746 = vmatprep.mubr.f32.mxu0 0.0
    %747 = vmatmul.mubr.f32.gmra.mrb[0].mxu0 %v677
    %v748 = vpop.f32.mrb[0].mxu0
    %v749 = vadd.f32 %v675, %v748
    %v750 = vpop.f32.mrb[0].mxu0
    %751 = vdwg.mxu0
    %v752 = vsel %vm30, %v749, -inf
    %753 = vmax.xlane.f32.xlu0 %v752
    %v754 = vpop.xlane.xlu0 %753
    %v755 = vsub.f32 %v749, %v754
    %v756 = vmul.f32 %v755, 1.442695
    %v757 = vpow.pop %v756
    %v758 = vrcp.pop %v757
    %v759 = vmul.f32 %v757, %v758
    %760 = vst.msk [vmem:[#allocation5] sm:$0xff] %vm30, %v759
    %v761 = vstv %s22
    %v762 = vadd.f32 %v759, %v761
    %v763 = vld [vmem:[%s2 + $0x210] sm:$0x1f]
    %v765 = vsel %vm30, %v762, 0
    %v768 = vsel %vm34, %v763, 0
    %770 = vmatprep.subr.mxu0 0.0
    %771 = vmatpush1.msra.mxu0 %v768
    %772 = vmatprep.subr.mxu0 0.0
    %773 = vmatpush1.msra.mxu0 0.0
    %774 = vmatprep.subr.mxu0 0.0
    %775 = vmatpush1.msra.mxu0 0.0
    %776 = vmatprep.subr.mxu0 0.0
    %777 = vmatpush1.msra.mxu0 0.0
    %778 = vmatprep.subr.mxu0 0.0
    %779 = vmatpush1.msra.mxu0 0.0
    %780 = vmatprep.subr.mxu0 0.0
    %781 = vmatpush1.msra.mxu0 0.0
    %782 = vmatprep.subr.mxu0 0.0
    %783 = vmatpush1.msra.mxu0 0.0
    %784 = vmatprep.subr.mxu0 0.0
    %785 = vmatpush1.msra.mxu0 0.0
    %786 = vmatprep.subr.mxu0 0.0
    %787 = vmatpush1.msra.mxu0 0.0
    %788 = vmatprep.subr.mxu0 0.0
    %789 = vmatpush1.msra.mxu0 0.0
    %790 = vmatprep.subr.mxu0 0.0
    %791 = vmatpush1.msra.mxu0 0.0
    %792 = vmatprep.subr.mxu0 0.0
    %793 = vmatpush1.msra.mxu0 0.0
    %794 = vmatprep.subr.mxu0 0.0
    %795 = vmatpush1.msra.mxu0 0.0
    %796 = vmatprep.subr.mxu0 0.0
    %797 = vmatpush1.msra.mxu0 0.0
    %798 = vmatprep.subr.mxu0 0.0
    %799 = vmatpush1.msra.mxu0 0.0
    %800 = vmatprep.subr.mxu0 0.0
    %801 = vmatpush1.msra.mxu0 0.0
    %802 = vmatprep.subr.mxu0 0.0
    %803 = vmatpush1.msra.mxu0 0.0
    %804 = vmatprep.subr.mxu0 0.0
    %805 = vmatpush1.msra.mxu0 0.0
    %806 = vmatprep.subr.mxu0 0.0
    %807 = vmatpush1.msra.mxu0 0.0
    %808 = vmatprep.subr.mxu0 0.0
    %809 = vmatpush1.msra.mxu0 0.0
    %810 = vmatprep.subr.mxu0 0.0
    %811 = vmatpush1.msra.mxu0 0.0
    %812 = vmatprep.subr.mxu0 0.0
    %813 = vmatpush1.msra.mxu0 0.0
    %814 = vmatprep.subr.mxu0 0.0
    %815 = vmatpush1.msra.mxu0 0.0
    %816 = vmatprep.subr.mxu0 0.0
    %817 = vmatpush1.msra.mxu0 0.0
    %818 = vmatprep.subr.mxu0 0.0
    %819 = vmatpush1.msra.mxu0 0.0
    %820 = vmatprep.subr.mxu0 0.0
    %821 = vmatpush1.msra.mxu0 0.0
    %822 = vmatprep.subr.mxu0 0.0
    %823 = vmatpush1.msra.mxu0 0.0
    %824 = vmatprep.subr.mxu0 0.0
    %825 = vmatpush1.msra.mxu0 0.0
    %826 = vmatprep.subr.mxu0 0.0
    %827 = vmatpush1.msra.mxu0 0.0
    %828 = vmatprep.subr.mxu0 0.0
    %829 = vmatpush1.msra.mxu0 0.0
    %830 = vmatprep.subr.mxu0 0.0
    %831 = vmatpush1.msra.mxu0 0.0
    %832 = vmatprep.subr.mxu0 0.0
    %833 = vmatpush1.msra.mxu0 0.0
    %834 = vmatprep.mubr.f32.mxu0 0.0
    %835 = vmatmul.mubr.f32.gmra.mrb[0].mxu0 %v765
    %v836 = vpop.f32.mrb[0].mxu0
    %v837 = vadd.f32 0.0, %v836
    %v838 = vpop.f32.mrb[0].mxu0
    %839 = vdwg.mxu0
    %v840 = vsub.f32 %v837, %v761
    %841 = vst.msk [vmem:[#allocation3] sm:$0xff] %vm30, %v840
    // Predicated region
    $region18: #{lgn_forward.1} parent=1 // pred_check
      _
    $region19: #{lgn_forward.1} parent=1 // pred_check_branch
      %843 = sbr.rel (0) target = $region21
    $region20: #{lgn_forward.1} parent=1 // pred_region
      %s845 = ssub.s32 128, 128
      %846 = vsyncadd [#allocation4], %s845
      %s848 = sshll.u32 [#allocation3], 4
      %s849 = int_to_ptr.vmem [resolvable:$true] %s848
      %851 = dma.vmem_to_hbm [thread:$0]  %s849, 128, %s4, [#allocation4]
    $region21: #{lgn_forward.1} parent=1 // pred_fallthru
      _
    // Predicated region
    $region22: #{lgn_forward.1} parent=1 // pred_check
      _
    $region23: #{lgn_forward.1} parent=1 // pred_check_branch
      %853 = sbr.rel (0) target = $region25
    $region24: #{lgn_forward.1} parent=1 // pred_region
      %s855 = ssub.s32 128, 128
      %856 = vsyncadd [#allocation6], %s855
      %s858 = sshll.u32 [#allocation5], 4
      %s859 = int_to_ptr.vmem [resolvable:$true] %s858
      %861 = dma.vmem_to_hbm [thread:$0]  %s859, 128, %s5, [#allocation6]
    $region25: #{lgn_forward.1} parent=1 // pred_fallthru
      _
    // Predicated region
    $region26: #{lgn_forward.1} parent=1 // pred_check
      _
    $region27: #{lgn_forward.1} parent=1 // pred_check_branch
      %863 = sbr.rel (0) target = $region29
    $region28: #{lgn_forward.1} parent=1 // pred_region
      %864 = dma.done [#allocation4], 128
    $region29: #{lgn_forward.1} parent=1 // pred_fallthru
      _
    // Predicated region
    $region30: #{lgn_forward.1} parent=1 // pred_check
      _
    $region31: #{lgn_forward.1} parent=1 // pred_check_branch
      %866 = sbr.rel (0) target = $region33
    $region32: #{lgn_forward.1} parent=1 // pred_region
      %867 = dma.done [#allocation6], 128
    $region33: #{lgn_forward.1} parent=1 // pred_fallthru
      _
    %868 = vsyncpa [#allocation4], 1
    %869 = vsyncpa [#allocation6], 1

</llo_original>
